<compile_context>
chip_gen: v7x
topology: tpu7x:2x2x1
jax: 0.10.0
libtpu: 0.0.40
codegen_flags: <defaults>
</compile_context>

<pallas_src>
import functools

import jax
import jax.numpy as jnp
from jax import lax
from jax.experimental import pallas as pl
from jax.experimental.pallas import tpu as pltpu

EPS = 1e-5
BF16 = jnp.bfloat16


# ----------------------------------------------------------------------------
# Host-side helpers: BN folding, banded / block-diagonal weight expansion.
# ----------------------------------------------------------------------------
def _round_up(a, b):
    return (a + b - 1) // b * b


def fold_bn(conv_bias, gamma, beta, mean, var):
    scale = gamma / jnp.sqrt(var + EPS)
    bias = beta - mean * scale + conv_bias * scale
    return scale, bias


def tile_c(v, W):
    """(C,) per-channel vector -> (1, W*C) row matching the flattened lanes."""
    return jnp.tile(v, W).reshape(1, -1)


def band_from_taps(taps, W, k_pad):
    """taps: (3, Cin, Cout) dx-taps -> (k_pad, W*Cout) banded weight.

    LHS lane layout is a flattened zero-padded image row (lane = u*Cin + c,
    padded column u in [0, W+2)).  Placing tap dx at rows u == v + dx folds
    all 3 horizontal taps of a conv row into ONE matmul (K-concatenation),
    with no lane slicing of the input needed.
    """
    kw, cin, cout = taps.shape
    u = jnp.arange(W + 2)[:, None]
    v = jnp.arange(W)[None, :]
    acc = jnp.zeros((W + 2, cin, W, cout), taps.dtype)
    for dx in range(kw):
        sel = (u == v + dx).astype(taps.dtype)
        acc = acc + jnp.einsum("uv,cd->ucvd", sel, taps[dx])
    band = acc.reshape((W + 2) * cin, W * cout)
    return jnp.pad(band, ((0, k_pad - (W + 2) * cin), (0, 0)))


def block_diag_1x1(w, W):
    """w: (Cin, Cout) -> (W*Cin, W*Cout) block-diagonal 1x1-conv weight."""
    cin, cout = w.shape
    eye = jnp.eye(W, dtype=w.dtype)
    return jnp.einsum("uv,cd->ucvd", eye, w).reshape(W * cin, W * cout)


# ----------------------------------------------------------------------------
# Fused kernel: conv1+bn1+relu, conv2+bn2, 1x1 shortcut+bn, CoordAtt, fuse+relu
# ----------------------------------------------------------------------------
def _res_cor_kernel(xp_ref, wb1_ref, wb2_ref, sbwc_ref, poolw_ref, w1h_ref,
                    sbm_ref, whrep_ref, ca1bd_ref, sbwm_ref, wwbd_ref,
                    o_ref, y1p_scr, *, H, W, Cout):
    WC = W * Cout
    xp = xp_ref[...]                                    # (H+2, K1) bf16

    sb = sbwc_ref[...]                                  # (8, WC) f32
    s1, b1, s2, b2 = sb[0:1], sb[1:2], sb[2:3], sb[3:4]
    ssc, bsc, bh, bw = sb[4:5], sb[5:6], sb[6:7], sb[7:8]

    # ---- conv1 + bn1 + relu: 3 banded matmuls over the padded rows --------
    acc1 = jnp.zeros((H, WC), jnp.float32)
    for dy in range(3):
        acc1 += jnp.dot(xp[dy:dy + H, :], wb1_ref[dy],
                        preferred_element_type=jnp.float32)
    y1 = jnp.maximum(acc1 * s1 + b1, 0.0)

    # ---- 1x1 shortcut conv + bn (banded weight, same padded rows) ---------
    res = jnp.dot(xp[1:H + 1, :], wb1_ref[3],
                  preferred_element_type=jnp.float32) * ssc + bsc

    # ---- stage zero-padded conv1 output in VMEM (no HBM round trip) -------
    y1p_scr[...] = jnp.zeros_like(y1p_scr)
    y1p_scr[1:H + 1, Cout:Cout + WC] = y1.astype(BF16)

    # ---- conv2 + bn2 (no ReLU) ---------------------------------------------
    acc2 = jnp.zeros((H, WC), jnp.float32)
    for dy in range(3):
        acc2 += jnp.dot(y1p_scr[dy:dy + H, :], wb2_ref[dy],
                        preferred_element_type=jnp.float32)
    t = acc2 * s2 + b2                                  # (H, W*Cout) f32
    t_bf = t.astype(BF16)

    def h_swish(v):
        return v * jnp.clip(v + 3.0, 0.0, 6.0) * (1.0 / 6.0)

    def sigmoid(v):
        v = jnp.clip(v, -30.0, 30.0)                    # avoid exp overflow
        return pl.reciprocal(1.0 + jnp.exp(-v), approx=True)

    sm = sbm_ref[...]                                   # (2, mip)    f32
    swm = sbwm_ref[...]                                 # (2, W*mip)  f32

    # ---- CoordAtt, H branch: mean over W (matmul), 1x1 convs ---------------
    x_h = jnp.dot(t_bf, poolw_ref[...], preferred_element_type=jnp.float32)
    yh = h_swish(jnp.dot(x_h.astype(BF16), w1h_ref[...],
                         preferred_element_type=jnp.float32)
                 * sm[0:1] + sm[1:2])                   # (H, mip)
    zh = jnp.dot(yh.astype(BF16), whrep_ref[...],
                 preferred_element_type=jnp.float32) + bh
    a_h = sigmoid(zh)                                   # (H, W*Cout)

    # ---- CoordAtt, W branch: mean over H, block-diagonal 1x1 convs ---------
    x_w = jnp.mean(t_bf.astype(jnp.float32), axis=0, keepdims=True)
    yw = h_swish(jnp.dot(x_w.astype(BF16), ca1bd_ref[...],
                         preferred_element_type=jnp.float32)
                 * swm[0:1] + swm[1:2])                 # (1, W*mip)
    zw = jnp.dot(yw.astype(BF16), wwbd_ref[...],
                 preferred_element_type=jnp.float32) + bw
    a_w = sigmoid(zw)                                   # (1, W*Cout)

    # ---- fuse: relu(out * a_w * a_h + residual) -----------------------------
    o = t * a_w * a_h + res
    o_ref[...] = jnp.maximum(o, 0.0).astype(o_ref.dtype)


# ----------------------------------------------------------------------------
# Full forward pass.
# ----------------------------------------------------------------------------
def res_cor_block_pallas(x_nhwc, p):
    N, H, W, Cin = x_nhwc.shape
    Cout = p["conv1_w"].shape[-1]
    mip = p["ca_conv1_w"].shape[-1]
    WC, WM = W * Cout, W * mip
    K1 = _round_up((W + 2) * Cin, 128)     # padded-row lane width, conv1/shortcut
    K2 = _round_up((W + 2) * Cout, 128)    # padded-row lane width, conv2

    # Gate the banded-weight expansion so it always fits comfortably in VMEM
    # (v7x only has 64 MiB physical / 32 MiB default scoped VMEM).
    band_bytes = (4 * K1 + 3 * K2) * WC * 2
    assert band_bytes < 24 * 1024 * 1024, "banded weights too large for VMEM"
    # TODO(synk): add a halo-tiled / per-channel-matmul fallback (with a
    # two-pass CoordAtt pooling) for large W*Cout where the band does not fit.

    # ---- fold all BNs (inference mode) into per-channel scale/bias ----
    s1, b1 = fold_bn(p["conv1_b"], *p["bn1"])
    s2, b2 = fold_bn(p["conv2_b"], *p["bn2"])
    ssc, bsc = fold_bn(p["sc_b"], *p["sc_bn"])
    sca, bca = fold_bn(p["ca_conv1_b"], *p["ca_bn1"])

    # ---- host-side weight prep (all tiny) ----
    sc_taps = jnp.stack([jnp.zeros_like(p["sc_w"]), p["sc_w"],
                         jnp.zeros_like(p["sc_w"])])           # 1x1 as center tap
    wb1 = jnp.stack([band_from_taps(p["conv1_w"][dy], W, K1) for dy in range(3)]
                    + [band_from_taps(sc_taps, W, K1)]).astype(BF16)   # (4,K1,WC)
    wb2 = jnp.stack([band_from_taps(p["conv2_w"][dy], W, K2)
                     for dy in range(3)]).astype(BF16)                 # (3,K2,WC)
    sbwc = jnp.concatenate([tile_c(s1, W), tile_c(b1, W),
                            tile_c(s2, W), tile_c(b2, W),
                            tile_c(ssc, W), tile_c(bsc, W),
                            tile_c(p["ca_h_b"], W), tile_c(p["ca_w_b"], W)],
                           axis=0).astype(jnp.float32)                 # (8, WC)
    poolw = (jnp.tile(jnp.eye(Cout, dtype=jnp.float32), (W, 1)) / W).astype(BF16)
    w1h = p["ca_conv1_w"].astype(BF16)                                 # (Cout, mip)
    sbm = jnp.stack([sca, bca]).astype(jnp.float32)                    # (2, mip)
    whrep = jnp.tile(p["ca_h_w"], (1, W)).astype(BF16)                 # (mip, WC)
    ca1bd = block_diag_1x1(p["ca_conv1_w"], W).astype(BF16)            # (WC, WM)
    sbwm = jnp.concatenate([tile_c(sca, W), tile_c(bca, W)],
                           axis=0).astype(jnp.float32)                 # (2, WM)
    wwbd = block_diag_1x1(p["ca_w_w"], W).astype(BF16)                 # (WM, WC)

    # ---- padded, lane-flattened bf16 input (cast BEFORE padding) ----
    xp = jnp.pad(x_nhwc.astype(BF16), ((0, 0), (1, 1), (1, 1), (0, 0)))
    xp = xp.reshape(N, H + 2, (W + 2) * Cin)
    if K1 > (W + 2) * Cin:
        xp = jnp.pad(xp, ((0, 0), (0, 0), (0, K1 - (W + 2) * Cin)))

    const2 = lambda b: (0, 0)
    const3 = lambda b: (0, 0, 0)
    out = pl.pallas_call(
        functools.partial(_res_cor_kernel, H=H, W=W, Cout=Cout),
        out_shape=jax.ShapeDtypeStruct((N, H, WC), BF16),
        grid=(N,),
        in_specs=[
            pl.BlockSpec((None, H + 2, K1), lambda b: (b, 0, 0)),   # xp (per batch)
            pl.BlockSpec((4, K1, WC), const3),                      # conv1 + shortcut bands
            pl.BlockSpec((3, K2, WC), const3),                      # conv2 bands
            pl.BlockSpec((8, WC), const2),                          # stacked scale/bias (WC)
            pl.BlockSpec((WC, Cout), const2),                       # W-mean pooling weight
            pl.BlockSpec((Cout, mip), const2),                      # CoordAtt conv1 (H branch)
            pl.BlockSpec((2, mip), const2),                         # stacked scale/bias (mip)
            pl.BlockSpec((mip, WC), const2),                        # conv_h, W-replicated
            pl.BlockSpec((WC, WM), const2),                         # CoordAtt conv1 block-diag
            pl.BlockSpec((2, WM), const2),                          # stacked scale/bias (W*mip)
            pl.BlockSpec((WM, WC), const2),                         # conv_w block-diag
        ],
        out_specs=pl.BlockSpec((None, H, WC), lambda b: (b, 0, 0)),
        scratch_shapes=[pltpu.VMEM((H + 2, K2), BF16)],             # padded conv1 output
        compiler_params=pltpu.CompilerParams(
            dimension_semantics=("parallel",),
            vmem_limit_bytes=32 * 1024 * 1024),
    )(xp, wb1, wb2, sbwc, poolw, w1h, sbm, whrep, ca1bd, sbwm, wwbd)

    return out.reshape(N, H, W, Cout)


# ----------------------------------------------------------------------------
# Parameter init + pure-JAX f32 reference (lax.conv) for validation.
# ----------------------------------------------------------------------------
def init_params(key, cin, cout):
    mip = max(8, cout // 32)
    ks = list(jax.random.split(key, 16))
    n = lambda k, s, sc=0.1: sc * jax.random.normal(k, s, jnp.float32)

    def bn_params(k, c):
        k1, k2, k3, k4 = jax.random.split(k, 4)
        gamma = 1.0 + 0.1 * jax.random.normal(k1, (c,), jnp.float32)
        beta = 0.1 * jax.random.normal(k2, (c,), jnp.float32)
        mean = 0.1 * jax.random.normal(k3, (c,), jnp.float32)
        var = jax.random.uniform(k4, (c,), jnp.float32, 0.5, 1.5)
        return gamma, beta, mean, var

    return {
        "conv1_w": n(ks[0], (3, 3, cin, cout)), "conv1_b": n(ks[1], (cout,)),
        "bn1": bn_params(ks[2], cout),
        "conv2_w": n(ks[3], (3, 3, cout, cout)), "conv2_b": n(ks[4], (cout,)),
        "bn2": bn_params(ks[5], cout),
        "sc_w": n(ks[6], (cin, cout)), "sc_b": n(ks[7], (cout,)),
        "sc_bn": bn_params(ks[8], cout),
        "ca_conv1_w": n(ks[9], (cout, mip)), "ca_conv1_b": n(ks[10], (mip,)),
        "ca_bn1": bn_params(ks[11], mip),
        "ca_h_w": n(ks[12], (mip, cout)), "ca_h_b": n(ks[13], (cout,)),
        "ca_w_w": n(ks[14], (mip, cout)), "ca_w_b": n(ks[15], (cout,)),
    }


def reference_forward(x, p):
    def bn(y, prm):
        g, b, m, v = prm
        return (y - m) / jnp.sqrt(v + EPS) * g + b

    def conv3x3(y, w, b):
        return lax.conv_general_dilated(
            y, w, (1, 1), "SAME",
            dimension_numbers=("NHWC", "HWIO", "NHWC")) + b

    N, H, W, Cin = x.shape
    out = jax.nn.relu(bn(conv3x3(x, p["conv1_w"], p["conv1_b"]), p["bn1"]))
    out = bn(conv3x3(out, p["conv2_w"], p["conv2_b"]), p["bn2"])
    res = bn(jnp.einsum("nhwc,cd->nhwd", x, p["sc_w"]) + p["sc_b"], p["sc_bn"])

    x_h = jnp.mean(out, axis=2)                       # (N, H, C)
    x_w = jnp.mean(out, axis=1)                       # (N, W, C)
    y = jnp.concatenate([x_h, x_w], axis=1)           # (N, H+W, C)
    y = bn(jnp.einsum("nlc,cm->nlm", y, p["ca_conv1_w"]) + p["ca_conv1_b"],
           p["ca_bn1"])
    y = y * jnp.clip(y + 3.0, 0.0, 6.0) / 6.0
    yh, yw = y[:, :H, :], y[:, H:, :]
    a_h = jax.nn.sigmoid(jnp.einsum("nhm,mc->nhc", yh, p["ca_h_w"]) + p["ca_h_b"])
    a_w = jax.nn.sigmoid(jnp.einsum("nwm,mc->nwc", yw, p["ca_w_w"]) + p["ca_w_b"])
    o = out * a_w[:, None, :, :] * a_h[:, :, None, :]
    return jax.nn.relu(o + res)


if __name__ == "__main__":
    B, Cin, Cout, H, W = 2, 4, 8, 16, 16   # torch input would be (2, 4, 16, 16) NCHW
    key = jax.random.PRNGKey(0)
    kx, kp = jax.random.split(key)
    x = jax.random.normal(kx, (B, H, W, Cin), jnp.float32)   # NHWC
    params = init_params(kp, Cin, Cout)

    fwd = jax.jit(res_cor_block_pallas)
    y = jax.block_until_ready(fwd(x, params)).astype(jnp.float32)
    y_ref = jax.block_until_ready(reference_forward(x, params))

    assert y.shape == (B, H, W, Cout)
    err = float(jnp.max(jnp.abs(y - y_ref)))
    # bf16 matmul inputs/output (f32 accumulation) => looser tolerance vs f32 ref.
    assert jnp.allclose(y, y_ref, atol=8e-2, rtol=5e-2), err
    print("KERNEL_OK")
</pallas_src>

<mosaic_0001>
module attributes {stable_mosaic.version = 11 : i64} {
  func.func @_res_cor_kernel(%arg0: i32, %arg1: memref<1x18x128xbf16, #tpu.memory_space<vmem>>, %arg2: memref<4x128x128xbf16, #tpu.memory_space<vmem>>, %arg3: memref<3x256x128xbf16, #tpu.memory_space<vmem>>, %arg4: memref<8x128xf32, #tpu.memory_space<vmem>>, %arg5: memref<128x8xbf16, #tpu.memory_space<vmem>>, %arg6: memref<8x8xbf16, #tpu.memory_space<vmem>>, %arg7: memref<2x8xf32, #tpu.memory_space<vmem>>, %arg8: memref<8x128xbf16, #tpu.memory_space<vmem>>, %arg9: memref<128x128xbf16, #tpu.memory_space<vmem>>, %arg10: memref<2x128xf32, #tpu.memory_space<vmem>>, %arg11: memref<128x128xbf16, #tpu.memory_space<vmem>>, %arg12: memref<1x16x128xbf16, #tpu.memory_space<vmem>>, %arg13: memref<18x256xbf16, #tpu.memory_space<vmem>>) attributes {dimension_semantics = [#tpu.dimension_semantics<parallel>], iteration_bounds = array<i64: 2>, scalar_prefetch = 0 : i64, scratch_operands = 1 : i64, tpu.core_type = #tpu.core_type<tc>, window_params = [{transform_indices = @transform_0, window_bounds = array<i64: 1, 18, 128>}, {pipeline_mode = #tpu.pipeline_mode<synchronous>, transform_indices = @transform_1, window_bounds = array<i64: 4, 128, 128>}, {pipeline_mode = #tpu.pipeline_mode<synchronous>, transform_indices = @transform_2, window_bounds = array<i64: 3, 256, 128>}, {pipeline_mode = #tpu.pipeline_mode<synchronous>, transform_indices = @transform_3, window_bounds = array<i64: 8, 128>}, {pipeline_mode = #tpu.pipeline_mode<synchronous>, transform_indices = @transform_4, window_bounds = array<i64: 128, 8>}, {pipeline_mode = #tpu.pipeline_mode<synchronous>, transform_indices = @transform_5, window_bounds = array<i64: 8, 8>}, {pipeline_mode = #tpu.pipeline_mode<synchronous>, transform_indices = @transform_6, window_bounds = array<i64: 2, 8>}, {pipeline_mode = #tpu.pipeline_mode<synchronous>, transform_indices = @transform_7, window_bounds = array<i64: 8, 128>}, {pipeline_mode = #tpu.pipeline_mode<synchronous>, transform_indices = @transform_8, window_bounds = array<i64: 128, 128>}, {pipeline_mode = #tpu.pipeline_mode<synchronous>, transform_indices = @transform_9, window_bounds = array<i64: 2, 128>}, {pipeline_mode = #tpu.pipeline_mode<synchronous>, transform_indices = @transform_10, window_bounds = array<i64: 128, 128>}, {transform_indices = @transform_11, window_bounds = array<i64: 1, 16, 128>}]} {
    %c0 = arith.constant 0 : index
    %c0_0 = arith.constant 0 : index
    %c0_1 = arith.constant 0 : index
    %0 = vector.load %arg1[%c0, %c0_0, %c0_1] : memref<1x18x128xbf16, #tpu.memory_space<vmem>>, vector<1x18x128xbf16>
    %1 = vector.shape_cast %0 : vector<1x18x128xbf16> to vector<18x128xbf16>
    %c0_2 = arith.constant 0 : index
    %c0_3 = arith.constant 0 : index
    %2 = vector.load %arg4[%c0_2, %c0_3] : memref<8x128xf32, #tpu.memory_space<vmem>>, vector<8x128xf32>
    %3 = vector.extract_strided_slice %2 {offsets = [0, 0], sizes = [1, 128], strides = [1, 1]} : vector<8x128xf32> to vector<1x128xf32>
    %4 = vector.extract_strided_slice %2 {offsets = [1, 0], sizes = [1, 128], strides = [1, 1]} : vector<8x128xf32> to vector<1x128xf32>
    %5 = vector.extract_strided_slice %2 {offsets = [2, 0], sizes = [1, 128], strides = [1, 1]} : vector<8x128xf32> to vector<1x128xf32>
    %6 = vector.extract_strided_slice %2 {offsets = [3, 0], sizes = [1, 128], strides = [1, 1]} : vector<8x128xf32> to vector<1x128xf32>
    %7 = vector.extract_strided_slice %2 {offsets = [4, 0], sizes = [1, 128], strides = [1, 1]} : vector<8x128xf32> to vector<1x128xf32>
    %8 = vector.extract_strided_slice %2 {offsets = [5, 0], sizes = [1, 128], strides = [1, 1]} : vector<8x128xf32> to vector<1x128xf32>
    %9 = vector.extract_strided_slice %2 {offsets = [6, 0], sizes = [1, 128], strides = [1, 1]} : vector<8x128xf32> to vector<1x128xf32>
    %10 = vector.extract_strided_slice %2 {offsets = [7, 0], sizes = [1, 128], strides = [1, 1]} : vector<8x128xf32> to vector<1x128xf32>
    %cst = arith.constant 0.000000e+00 : f32
    %11 = vector.broadcast %cst : f32 to vector<16x128xf32>
    %12 = vector.extract_strided_slice %1 {offsets = [0, 0], sizes = [16, 128], strides = [1, 1]} : vector<18x128xbf16> to vector<16x128xbf16>
    %c0_4 = arith.constant 0 : index
    %c0_5 = arith.constant 0 : index
    %c0_6 = arith.constant 0 : index
    %13 = vector.load %arg2[%c0_4, %c0_5, %c0_6] : memref<4x128x128xbf16, #tpu.memory_space<vmem>>, vector<1x128x128xbf16>
    %14 = vector.shape_cast %13 : vector<1x128x128xbf16> to vector<128x128xbf16>
    %cst_7 = arith.constant dense<0.000000e+00> : vector<16x128xf32>
    %15 = tpu.matmul %12, %14, %cst_7 {dimension_numbers = #tpu.dot_dimension_numbers<[1], [0], [0], [1], [0, 0, 1, 1], [], []>} : vector<16x128xbf16>, vector<128x128xbf16>, vector<16x128xf32> -> vector<16x128xf32>
    %16 = arith.addf %11, %15 : vector<16x128xf32>
    %17 = vector.extract_strided_slice %1 {offsets = [1, 0], sizes = [16, 128], strides = [1, 1]} : vector<18x128xbf16> to vector<16x128xbf16>
    %c1 = arith.constant 1 : index
    %c0_8 = arith.constant 0 : index
    %c0_9 = arith.constant 0 : index
    %18 = vector.load %arg2[%c1, %c0_8, %c0_9] : memref<4x128x128xbf16, #tpu.memory_space<vmem>>, vector<1x128x128xbf16>
    %19 = vector.shape_cast %18 : vector<1x128x128xbf16> to vector<128x128xbf16>
    %cst_10 = arith.constant dense<0.000000e+00> : vector<16x128xf32>
    %20 = tpu.matmul %17, %19, %cst_10 {dimension_numbers = #tpu.dot_dimension_numbers<[1], [0], [0], [1], [0, 0, 1, 1], [], []>} : vector<16x128xbf16>, vector<128x128xbf16>, vector<16x128xf32> -> vector<16x128xf32>
    %21 = arith.addf %16, %20 : vector<16x128xf32>
    %22 = vector.extract_strided_slice %1 {offsets = [2, 0], sizes = [16, 128], strides = [1, 1]} : vector<18x128xbf16> to vector<16x128xbf16>
    %c2 = arith.constant 2 : index
    %c0_11 = arith.constant 0 : index
    %c0_12 = arith.constant 0 : index
    %23 = vector.load %arg2[%c2, %c0_11, %c0_12] : memref<4x128x128xbf16, #tpu.memory_space<vmem>>, vector<1x128x128xbf16>
    %24 = vector.shape_cast %23 : vector<1x128x128xbf16> to vector<128x128xbf16>
    %cst_13 = arith.constant dense<0.000000e+00> : vector<16x128xf32>
    %25 = tpu.matmul %22, %24, %cst_13 {dimension_numbers = #tpu.dot_dimension_numbers<[1], [0], [0], [1], [0, 0, 1, 1], [], []>} : vector<16x128xbf16>, vector<128x128xbf16>, vector<16x128xf32> -> vector<16x128xf32>
    %26 = arith.addf %21, %25 : vector<16x128xf32>
    %27 = vector.broadcast %3 : vector<1x128xf32> to vector<16x128xf32>
    %28 = arith.mulf %26, %27 : vector<16x128xf32>
    %29 = vector.broadcast %4 : vector<1x128xf32> to vector<16x128xf32>
    %30 = arith.addf %28, %29 : vector<16x128xf32>
    %cst_14 = arith.constant 0.000000e+00 : f32
    %31 = vector.broadcast %cst_14 : f32 to vector<16x128xf32>
    %32 = arith.maximumf %30, %31 : vector<16x128xf32>
    %33 = vector.extract_strided_slice %1 {offsets = [1, 0], sizes = [16, 128], strides = [1, 1]} : vector<18x128xbf16> to vector<16x128xbf16>
    %c3 = arith.constant 3 : index
    %c0_15 = arith.constant 0 : index
    %c0_16 = arith.constant 0 : index
    %34 = vector.load %arg2[%c3, %c0_15, %c0_16] : memref<4x128x128xbf16, #tpu.memory_space<vmem>>, vector<1x128x128xbf16>
    %35 = vector.shape_cast %34 : vector<1x128x128xbf16> to vector<128x128xbf16>
    %cst_17 = arith.constant dense<0.000000e+00> : vector<16x128xf32>
    %36 = tpu.matmul %33, %35, %cst_17 {dimension_numbers = #tpu.dot_dimension_numbers<[1], [0], [0], [1], [0, 0, 1, 1], [], []>} : vector<16x128xbf16>, vector<128x128xbf16>, vector<16x128xf32> -> vector<16x128xf32>
    %37 = vector.broadcast %7 : vector<1x128xf32> to vector<16x128xf32>
    %38 = arith.mulf %36, %37 : vector<16x128xf32>
    %39 = vector.broadcast %8 : vector<1x128xf32> to vector<16x128xf32>
    %40 = arith.addf %38, %39 : vector<16x128xf32>
    %cst_18 = arith.constant 0.000000e+00 : bf16
    %41 = vector.broadcast %cst_18 : bf16 to vector<18x256xbf16>
    %c0_19 = arith.constant 0 : index
    %c0_20 = arith.constant 0 : index
    %42 = vector.load %arg13[%c0_19, %c0_20] : memref<18x256xbf16, #tpu.memory_space<vmem>>, vector<18x256xbf16>
    tpu.vector_store %arg13[%c0_19, %c0_20], %41 {strides = array<i32>} : memref<18x256xbf16, #tpu.memory_space<vmem>>, vector<18x256xbf16>,
    %43 = arith.truncf %32 : vector<16x128xf32> to vector<16x128xbf16>
    %c1_21 = arith.constant 1 : index
    %c8 = arith.constant 8 : index
    %44 = vector.load %arg13[%c1_21, %c8] : memref<18x256xbf16, #tpu.memory_space<vmem>>, vector<16x128xbf16>
    tpu.vector_store %arg13[%c1_21, %c8], %43 {strides = array<i32>} : memref<18x256xbf16, #tpu.memory_space<vmem>>, vector<16x128xbf16>,
    %cst_22 = arith.constant 0.000000e+00 : f32
    %45 = vector.broadcast %cst_22 : f32 to vector<16x128xf32>
    %c0_23 = arith.constant 0 : index
    %c0_24 = arith.constant 0 : index
    %46 = vector.load %arg13[%c0_23, %c0_24] : memref<18x256xbf16, #tpu.memory_space<vmem>>, vector<16x256xbf16>
    %c0_25 = arith.constant 0 : index
    %c0_26 = arith.constant 0 : index
    %c0_27 = arith.constant 0 : index
    %47 = vector.load %arg3[%c0_25, %c0_26, %c0_27] : memref<3x256x128xbf16, #tpu.memory_space<vmem>>, vector<1x256x128xbf16>
    %48 = vector.shape_cast %47 : vector<1x256x128xbf16> to vector<256x128xbf16>
    %cst_28 = arith.constant dense<0.000000e+00> : vector<16x128xf32>
    %49 = tpu.matmul %46, %48, %cst_28 {dimension_numbers = #tpu.dot_dimension_numbers<[1], [0], [0], [1], [0, 0, 1, 1], [], []>} : vector<16x256xbf16>, vector<256x128xbf16>, vector<16x128xf32> -> vector<16x128xf32>
    %50 = arith.addf %45, %49 : vector<16x128xf32>
    %c1_29 = arith.constant 1 : index
    %c0_30 = arith.constant 0 : index
    %51 = vector.load %arg13[%c1_29, %c0_30] : memref<18x256xbf16, #tpu.memory_space<vmem>>, vector<16x256xbf16>
    %c1_31 = arith.constant 1 : index
    %c0_32 = arith.constant 0 : index
    %c0_33 = arith.constant 0 : index
    %52 = vector.load %arg3[%c1_31, %c0_32, %c0_33] : memref<3x256x128xbf16, #tpu.memory_space<vmem>>, vector<1x256x128xbf16>
    %53 = vector.shape_cast %52 : vector<1x256x128xbf16> to vector<256x128xbf16>
    %cst_34 = arith.constant dense<0.000000e+00> : vector<16x128xf32>
    %54 = tpu.matmul %51, %53, %cst_34 {dimension_numbers = #tpu.dot_dimension_numbers<[1], [0], [0], [1], [0, 0, 1, 1], [], []>} : vector<16x256xbf16>, vector<256x128xbf16>, vector<16x128xf32> -> vector<16x128xf32>
    %55 = arith.addf %50, %54 : vector<16x128xf32>
    %c2_35 = arith.constant 2 : index
    %c0_36 = arith.constant 0 : index
    %56 = vector.load %arg13[%c2_35, %c0_36] : memref<18x256xbf16, #tpu.memory_space<vmem>>, vector<16x256xbf16>
    %c2_37 = arith.constant 2 : index
    %c0_38 = arith.constant 0 : index
    %c0_39 = arith.constant 0 : index
    %57 = vector.load %arg3[%c2_37, %c0_38, %c0_39] : memref<3x256x128xbf16, #tpu.memory_space<vmem>>, vector<1x256x128xbf16>
    %58 = vector.shape_cast %57 : vector<1x256x128xbf16> to vector<256x128xbf16>
    %cst_40 = arith.constant dense<0.000000e+00> : vector<16x128xf32>
    %59 = tpu.matmul %56, %58, %cst_40 {dimension_numbers = #tpu.dot_dimension_numbers<[1], [0], [0], [1], [0, 0, 1, 1], [], []>} : vector<16x256xbf16>, vector<256x128xbf16>, vector<16x128xf32> -> vector<16x128xf32>
    %60 = arith.addf %55, %59 : vector<16x128xf32>
    %61 = vector.broadcast %5 : vector<1x128xf32> to vector<16x128xf32>
    %62 = arith.mulf %60, %61 : vector<16x128xf32>
    %63 = vector.broadcast %6 : vector<1x128xf32> to vector<16x128xf32>
    %64 = arith.addf %62, %63 : vector<16x128xf32>
    %65 = arith.truncf %64 : vector<16x128xf32> to vector<16x128xbf16>
    %c0_41 = arith.constant 0 : index
    %c0_42 = arith.constant 0 : index
    %66 = vector.load %arg7[%c0_41, %c0_42] : memref<2x8xf32, #tpu.memory_space<vmem>>, vector<2x8xf32>
    %c0_43 = arith.constant 0 : index
    %c0_44 = arith.constant 0 : index
    %67 = vector.load %arg10[%c0_43, %c0_44] : memref<2x128xf32, #tpu.memory_space<vmem>>, vector<2x128xf32>
    %c0_45 = arith.constant 0 : index
    %c0_46 = arith.constant 0 : index
    %68 = vector.load %arg5[%c0_45, %c0_46] : memref<128x8xbf16, #tpu.memory_space<vmem>>, vector<128x8xbf16>
    %cst_47 = arith.constant dense<0.000000e+00> : vector<16x8xf32>
    %69 = tpu.matmul %65, %68, %cst_47 {dimension_numbers = #tpu.dot_dimension_numbers<[1], [0], [0], [1], [0, 0, 1, 1], [], []>} : vector<16x128xbf16>, vector<128x8xbf16>, vector<16x8xf32> -> vector<16x8xf32>
    %70 = arith.truncf %69 : vector<16x8xf32> to vector<16x8xbf16>
    %c0_48 = arith.constant 0 : index
    %c0_49 = arith.constant 0 : index
    %71 = vector.load %arg6[%c0_48, %c0_49] : memref<8x8xbf16, #tpu.memory_space<vmem>>, vector<8x8xbf16>
    %cst_50 = arith.constant dense<0.000000e+00> : vector<16x8xf32>
    %72 = tpu.matmul %70, %71, %cst_50 {dimension_numbers = #tpu.dot_dimension_numbers<[1], [0], [0], [1], [0, 0, 1, 1], [], []>} : vector<16x8xbf16>, vector<8x8xbf16>, vector<16x8xf32> -> vector<16x8xf32>
    %73 = vector.extract_strided_slice %66 {offsets = [0, 0], sizes = [1, 8], strides = [1, 1]} : vector<2x8xf32> to vector<1x8xf32>
    %74 = vector.broadcast %73 : vector<1x8xf32> to vector<16x8xf32>
    %75 = arith.mulf %72, %74 : vector<16x8xf32>
    %76 = vector.extract_strided_slice %66 {offsets = [1, 0], sizes = [1, 8], strides = [1, 1]} : vector<2x8xf32> to vector<1x8xf32>
    %77 = vector.broadcast %76 : vector<1x8xf32> to vector<16x8xf32>
    %78 = arith.addf %75, %77 : vector<16x8xf32>
    %cst_51 = arith.constant 3.000000e+00 : f32
    %79 = vector.broadcast %cst_51 : f32 to vector<16x8xf32>
    %80 = arith.addf %78, %79 : vector<16x8xf32>
    %cst_52 = arith.constant 0.000000e+00 : f32
    %cst_53 = arith.constant 6.000000e+00 : f32
    %81 = vector.broadcast %cst_52 : f32 to vector<16x8xf32>
    %82 = arith.maximumf %81, %80 : vector<16x8xf32>
    %83 = vector.broadcast %cst_53 : f32 to vector<16x8xf32>
    %84 = arith.minimumf %83, %82 : vector<16x8xf32>
    %85 = arith.mulf %78, %84 : vector<16x8xf32>
    %cst_54 = arith.constant 0.166666672 : f32
    %86 = vector.broadcast %cst_54 : f32 to vector<16x8xf32>
    %87 = arith.mulf %85, %86 : vector<16x8xf32>
    %88 = arith.truncf %87 : vector<16x8xf32> to vector<16x8xbf16>
    %c0_55 = arith.constant 0 : index
    %c0_56 = arith.constant 0 : index
    %89 = vector.load %arg8[%c0_55, %c0_56] : memref<8x128xbf16, #tpu.memory_space<vmem>>, vector<8x128xbf16>
    %cst_57 = arith.constant dense<0.000000e+00> : vector<16x128xf32>
    %90 = tpu.matmul %88, %89, %cst_57 {dimension_numbers = #tpu.dot_dimension_numbers<[1], [0], [0], [1], [0, 0, 1, 1], [], []>} : vector<16x8xbf16>, vector<8x128xbf16>, vector<16x128xf32> -> vector<16x128xf32>
    %91 = vector.broadcast %9 : vector<1x128xf32> to vector<16x128xf32>
    %92 = arith.addf %90, %91 : vector<16x128xf32>
    %cst_58 = arith.constant -3.000000e+01 : f32
    %cst_59 = arith.constant 3.000000e+01 : f32
    %93 = vector.broadcast %cst_58 : f32 to vector<16x128xf32>
    %94 = arith.maximumf %93, %92 : vector<16x128xf32>
    %95 = vector.broadcast %cst_59 : f32 to vector<16x128xf32>
    %96 = arith.minimumf %95, %94 : vector<16x128xf32>
    %cst_60 = arith.constant 0.000000e+00 : f32
    %97 = vector.broadcast %cst_60 : f32 to vector<16x128xf32>
    %98 = arith.subf %97, %96 : vector<16x128xf32>
    %99 = math.exp %98 : vector<16x128xf32>
    %cst_61 = arith.constant 1.000000e+00 : f32
    %100 = vector.broadcast %cst_61 : f32 to vector<16x128xf32>
    %101 = arith.addf %100, %99 : vector<16x128xf32>
    %102 = tpu.reciprocal %101 {approx = true} : vector<16x128xf32> -> vector<16x128xf32>
    %103 = arith.extf %65 : vector<16x128xbf16> to vector<16x128xf32>
    %cst_62 = arith.constant dense<0.000000e+00> : vector<128xf32>
    %104 = vector.multi_reduction <add>, %103, %cst_62 [0] : vector<16x128xf32> to vector<128xf32>
    %105 = vector.shape_cast %104 : vector<128xf32> to vector<1x128xf32>
    %cst_63 = arith.constant 1.600000e+01 : f32
    %106 = vector.broadcast %cst_63 : f32 to vector<1x128xf32>
    %107 = arith.divf %105, %106 : vector<1x128xf32>
    %108 = arith.truncf %107 : vector<1x128xf32> to vector<1x128xbf16>
    %c0_64 = arith.constant 0 : index
    %c0_65 = arith.constant 0 : index
    %109 = vector.load %arg9[%c0_64, %c0_65] : memref<128x128xbf16, #tpu.memory_space<vmem>>, vector<128x128xbf16>
    %cst_66 = arith.constant dense<0.000000e+00> : vector<1x128xf32>
    %110 = tpu.matmul %108, %109, %cst_66 {dimension_numbers = #tpu.dot_dimension_numbers<[1], [0], [0], [1], [0, 0, 1, 1], [], []>} : vector<1x128xbf16>, vector<128x128xbf16>, vector<1x128xf32> -> vector<1x128xf32>
    %111 = vector.extract_strided_slice %67 {offsets = [0, 0], sizes = [1, 128], strides = [1, 1]} : vector<2x128xf32> to vector<1x128xf32>
    %112 = arith.mulf %110, %111 : vector<1x128xf32>
    %113 = vector.extract_strided_slice %67 {offsets = [1, 0], sizes = [1, 128], strides = [1, 1]} : vector<2x128xf32> to vector<1x128xf32>
    %114 = arith.addf %112, %113 : vector<1x128xf32>
    %cst_67 = arith.constant 3.000000e+00 : f32
    %115 = vector.broadcast %cst_67 : f32 to vector<1x128xf32>
    %116 = arith.addf %114, %115 : vector<1x128xf32>
    %cst_68 = arith.constant 0.000000e+00 : f32
    %cst_69 = arith.constant 6.000000e+00 : f32
    %117 = vector.broadcast %cst_68 : f32 to vector<1x128xf32>
    %118 = arith.maximumf %117, %116 : vector<1x128xf32>
    %119 = vector.broadcast %cst_69 : f32 to vector<1x128xf32>
    %120 = arith.minimumf %119, %118 : vector<1x128xf32>
    %121 = arith.mulf %114, %120 : vector<1x128xf32>
    %cst_70 = arith.constant 0.166666672 : f32
    %122 = vector.broadcast %cst_70 : f32 to vector<1x128xf32>
    %123 = arith.mulf %121, %122 : vector<1x128xf32>
    %124 = arith.truncf %123 : vector<1x128xf32> to vector<1x128xbf16>
    %c0_71 = arith.constant 0 : index
    %c0_72 = arith.constant 0 : index
    %125 = vector.load %arg11[%c0_71, %c0_72] : memref<128x128xbf16, #tpu.memory_space<vmem>>, vector<128x128xbf16>
    %cst_73 = arith.constant dense<0.000000e+00> : vector<1x128xf32>
    %126 = tpu.matmul %124, %125, %cst_73 {dimension_numbers = #tpu.dot_dimension_numbers<[1], [0], [0], [1], [0, 0, 1, 1], [], []>} : vector<1x128xbf16>, vector<128x128xbf16>, vector<1x128xf32> -> vector<1x128xf32>
    %127 = arith.addf %126, %10 : vector<1x128xf32>
    %cst_74 = arith.constant -3.000000e+01 : f32
    %cst_75 = arith.constant 3.000000e+01 : f32
    %128 = vector.broadcast %cst_74 : f32 to vector<1x128xf32>
    %129 = arith.maximumf %128, %127 : vector<1x128xf32>
    %130 = vector.broadcast %cst_75 : f32 to vector<1x128xf32>
    %131 = arith.minimumf %130, %129 : vector<1x128xf32>
    %cst_76 = arith.constant 0.000000e+00 : f32
    %132 = vector.broadcast %cst_76 : f32 to vector<1x128xf32>
    %133 = arith.subf %132, %131 : vector<1x128xf32>
    %134 = math.exp %133 : vector<1x128xf32>
    %cst_77 = arith.constant 1.000000e+00 : f32
    %135 = vector.broadcast %cst_77 : f32 to vector<1x128xf32>
    %136 = arith.addf %135, %134 : vector<1x128xf32>
    %137 = tpu.reciprocal %136 {approx = true} : vector<1x128xf32> -> vector<1x128xf32>
    %138 = vector.broadcast %137 : vector<1x128xf32> to vector<16x128xf32>
    %139 = arith.mulf %64, %138 : vector<16x128xf32>
    %140 = arith.mulf %139, %102 : vector<16x128xf32>
    %141 = arith.addf %140, %40 : vector<16x128xf32>
    %cst_78 = arith.constant 0.000000e+00 : f32
    %142 = vector.broadcast %cst_78 : f32 to vector<16x128xf32>
    %143 = arith.maximumf %141, %142 : vector<16x128xf32>
    %144 = arith.truncf %143 : vector<16x128xf32> to vector<16x128xbf16>
    %c0_79 = arith.constant 0 : index
    %c0_80 = arith.constant 0 : index
    %c0_81 = arith.constant 0 : index
    %145 = vector.load %arg12[%c0_79, %c0_80, %c0_81] : memref<1x16x128xbf16, #tpu.memory_space<vmem>>, vector<1x16x128xbf16>
    %146 = vector.shape_cast %145 : vector<1x16x128xbf16> to vector<16x128xbf16>
    %147 = vector.shape_cast %144 : vector<16x128xbf16> to vector<1x16x128xbf16>
    tpu.vector_store %arg12[%c0_79, %c0_80, %c0_81], %147 {strides = array<i32>} : memref<1x16x128xbf16, #tpu.memory_space<vmem>>, vector<1x16x128xbf16>,
    return
  }
  func.func @transform_0(%arg0: i32) -> (i32, i32, i32) {
    %c0_i32 = arith.constant 0 : i32
    %c0_i32_0 = arith.constant 0 : i32
    %c0_i32_1 = arith.constant 0 : i32
    return %arg0, %c0_i32, %c0_i32_0 : i32, i32, i32
  }
  func.func @transform_1(%arg0: i32) -> (i32, i32, i32) {
    %c0_i32 = arith.constant 0 : i32
    %c0_i32_0 = arith.constant 0 : i32
    %c0_i32_1 = arith.constant 0 : i32
    %c0_i32_2 = arith.constant 0 : i32
    return %c0_i32, %c0_i32_0, %c0_i32_1 : i32, i32, i32
  }
  func.func @transform_2(%arg0: i32) -> (i32, i32, i32) {
    %c0_i32 = arith.constant 0 : i32
    %c0_i32_0 = arith.constant 0 : i32
    %c0_i32_1 = arith.constant 0 : i32
    %c0_i32_2 = arith.constant 0 : i32
    return %c0_i32, %c0_i32_0, %c0_i32_1 : i32, i32, i32
  }
  func.func @transform_3(%arg0: i32) -> (i32, i32) {
    %c0_i32 = arith.constant 0 : i32
    %c0_i32_0 = arith.constant 0 : i32
    %c0_i32_1 = arith.constant 0 : i32
    return %c0_i32, %c0_i32_0 : i32, i32
  }
  func.func @transform_4(%arg0: i32) -> (i32, i32) {
    %c0_i32 = arith.constant 0 : i32
    %c0_i32_0 = arith.constant 0 : i32
    %c0_i32_1 = arith.constant 0 : i32
    return %c0_i32, %c0_i32_0 : i32, i32
  }
  func.func @transform_5(%arg0: i32) -> (i32, i32) {
    %c0_i32 = arith.constant 0 : i32
    %c0_i32_0 = arith.constant 0 : i32
    %c0_i32_1 = arith.constant 0 : i32
    return %c0_i32, %c0_i32_0 : i32, i32
  }
  func.func @transform_6(%arg0: i32) -> (i32, i32) {
    %c0_i32 = arith.constant 0 : i32
    %c0_i32_0 = arith.constant 0 : i32
    %c0_i32_1 = arith.constant 0 : i32
    return %c0_i32, %c0_i32_0 : i32, i32
  }
  func.func @transform_7(%arg0: i32) -> (i32, i32) {
    %c0_i32 = arith.constant 0 : i32
    %c0_i32_0 = arith.constant 0 : i32
    %c0_i32_1 = arith.constant 0 : i32
    return %c0_i32, %c0_i32_0 : i32, i32
  }
  func.func @transform_8(%arg0: i32) -> (i32, i32) {
    %c0_i32 = arith.constant 0 : i32
    %c0_i32_0 = arith.constant 0 : i32
    %c0_i32_1 = arith.constant 0 : i32
    return %c0_i32, %c0_i32_0 : i32, i32
  }
  func.func @transform_9(%arg0: i32) -> (i32, i32) {
    %c0_i32 = arith.constant 0 : i32
    %c0_i32_0 = arith.constant 0 : i32
    %c0_i32_1 = arith.constant 0 : i32
    return %c0_i32, %c0_i32_0 : i32, i32
  }
  func.func @transform_10(%arg0: i32) -> (i32, i32) {
    %c0_i32 = arith.constant 0 : i32
    %c0_i32_0 = arith.constant 0 : i32
    %c0_i32_1 = arith.constant 0 : i32
    return %c0_i32, %c0_i32_0 : i32, i32
  }
  func.func @transform_11(%arg0: i32) -> (i32, i32, i32) {
    %c0_i32 = arith.constant 0 : i32
    %c0_i32_0 = arith.constant 0 : i32
    %c0_i32_1 = arith.constant 0 : i32
    return %arg0, %c0_i32, %c0_i32_0 : i32, i32, i32
  }
}

</mosaic_0001>

<llo_original>
// kernel: tile.63
$region0: #{tile.63}
  #allocation0 [shape = 's32[1]{0}', space=sflag, size = 0x4, scoped, tag = 'scoped memory for tile.63']
  %s0 = inlined_call_operand.vmem [shape: f32[8], index: 0, kind: input, shape index: {}]
  %s1 = inlined_call_operand.vmem [shape: f32[16,8], index: 1, kind: output, shape index: {}]
  // Predicated region
  $region2: #{tile.63} parent=0 // pred_check
    _
  $region3: #{tile.63} parent=0 // pred_check_branch
    %3 = sbr.rel (0) target = $region5
  $region4: #{tile.63} parent=0 // pred_region
    _
  $region5: #{tile.63} parent=0 // pred_fallthru
    _
  %v4 = vld [vmem:[%s0] ss:$0 sm:$0xff]
  %5 = vst [vmem:[%s1] sm:$0xff] %v4
  %s6 = scalar_lea.vmem %s1, 8
  %7 = vst [vmem:[%s6] sm:$0xff] %v4

// kernel: tile.64
$region0: #{tile.64}
  %s0 = inlined_call_operand.vmem [shape: f32[16,8], index: 0, kind: input, shape index: {}]
  %s1 = inlined_call_operand.vmem [shape: f32[1,128], index: 1, kind: output, shape index: {}]
  $region1: #{tile.64} parent=0
    #allocation0 [shape = 'u8[4096]{0}', space=vmem, size = 0x1000, scoped, tag = 'scoped mem for output reshape']
    %v2 = vld [vmem:[%s0] sm:$0x1]
    %vm3 = vcmask 64512
    %4 = vst.msk [vmem:[#allocation0] sm:$0x1] %vm3, %v2
    %s5 = scalar_lea.vmem %s0, 15
    %v6 = vld [vmem:[%s5] sm:$0x1]
    %7 = vrot.lane.b32.xlu0 %v6, 120
    %v8 = vpop.permute.xlu0 %7
    %vm9 = vcmask 1048512
    %10 = vst.msk [vmem:[#allocation0] sm:$0x1] %vm9, %v8
    %s11 = scalar_lea.vmem %s0, 14
    %v12 = vld [vmem:[%s11] sm:$0x1]
    %13 = vrot.lane.b32.xlu0 %v12, 112
    %v14 = vpop.permute.xlu0 %13
    %vm15 = vcmask 982912
    %16 = vst.msk [vmem:[#allocation0] sm:$0x1] %vm15, %v14
    %s17 = scalar_lea.vmem %s0, 13
    %v18 = vld [vmem:[%s17] sm:$0x1]
    %19 = vrot.lane.b32.xlu0 %v18, 104
    %v20 = vpop.permute.xlu0 %19
    %vm21 = vcmask 917312
    %22 = vst.msk [vmem:[#allocation0] sm:$0x1] %vm21, %v20
    %s23 = scalar_lea.vmem %s0, 12
    %v24 = vld [vmem:[%s23] sm:$0x1]
    %25 = vrot.lane.b32.xlu0 %v24, 96
    %v26 = vpop.permute.xlu0 %25
    %vm27 = vcmask 851712
    %28 = vst.msk [vmem:[#allocation0] sm:$0x1] %vm27, %v26
    %s29 = scalar_lea.vmem %s0, 11
    %v30 = vld [vmem:[%s29] sm:$0x1]
    %31 = vrot.lane.b32.xlu0 %v30, 88
    %v32 = vpop.permute.xlu0 %31
    %vm33 = vcmask 786112
    %34 = vst.msk [vmem:[#allocation0] sm:$0x1] %vm33, %v32
    %s35 = scalar_lea.vmem %s0, 10
    %v36 = vld [vmem:[%s35] sm:$0x1]
    %37 = vrot.lane.b32.xlu0 %v36, 80
    %v38 = vpop.permute.xlu0 %37
    %vm39 = vcmask 720512
    %40 = vst.msk [vmem:[#allocation0] sm:$0x1] %vm39, %v38
    %s41 = scalar_lea.vmem %s0, 9
    %v42 = vld [vmem:[%s41] sm:$0x1]
    %43 = vrot.lane.b32.xlu0 %v42, 72
    %v44 = vpop.permute.xlu0 %43
    %vm45 = vcmask 654912
    %46 = vst.msk [vmem:[#allocation0] sm:$0x1] %vm45, %v44
    %s47 = scalar_lea.vmem %s0, 8
    %v48 = vld [vmem:[%s47] sm:$0x1]
    %49 = vrot.lane.b32.xlu0 %v48, 64
    %v50 = vpop.permute.xlu0 %49
    %vm51 = vcmask 589312
    %52 = vst.msk [vmem:[#allocation0] sm:$0x1] %vm51, %v50
    %s53 = scalar_lea.vmem %s0, 7
    %v54 = vld [vmem:[%s53] sm:$0x1]
    %55 = vrot.lane.b32.xlu0 %v54, 56
    %v56 = vpop.permute.xlu0 %55
    %vm57 = vcmask 523712
    %58 = vst.msk [vmem:[#allocation0] sm:$0x1] %vm57, %v56
    %s59 = scalar_lea.vmem %s0, 6
    %v60 = vld [vmem:[%s59] sm:$0x1]
    %61 = vrot.lane.b32.xlu0 %v60, 48
    %v62 = vpop.permute.xlu0 %61
    %vm63 = vcmask 458112
    %64 = vst.msk [vmem:[#allocation0] sm:$0x1] %vm63, %v62
    %s65 = scalar_lea.vmem %s0, 5
    %v66 = vld [vmem:[%s65] sm:$0x1]
    %67 = vrot.lane.b32.xlu0 %v66, 40
    %v68 = vpop.permute.xlu0 %67
    %vm69 = vcmask 392512
    %70 = vst.msk [vmem:[#allocation0] sm:$0x1] %vm69, %v68
    %s71 = scalar_lea.vmem %s0, 4
    %v72 = vld [vmem:[%s71] sm:$0x1]
    %73 = vrot.lane.b32.xlu0 %v72, 32
    %v74 = vpop.permute.xlu0 %73
    %vm75 = vcmask 326912
    %76 = vst.msk [vmem:[#allocation0] sm:$0x1] %vm75, %v74
    %s77 = scalar_lea.vmem %s0, 3
    %v78 = vld [vmem:[%s77] sm:$0x1]
    %79 = vrot.lane.b32.xlu0 %v78, 24
    %v80 = vpop.permute.xlu0 %79
    %vm81 = vcmask 261312
    %82 = vst.msk [vmem:[#allocation0] sm:$0x1] %vm81, %v80
    %s83 = scalar_lea.vmem %s0, 2
    %v84 = vld [vmem:[%s83] sm:$0x1]
    %85 = vrot.lane.b32.xlu0 %v84, 16
    %v86 = vpop.permute.xlu0 %85
    %vm87 = vcmask 195712
    %88 = vst.msk [vmem:[#allocation0] sm:$0x1] %vm87, %v86
    %s89 = scalar_lea.vmem %s0, 1
    %v90 = vld [vmem:[%s89] sm:$0x1]
    %91 = vrot.lane.b32.xlu0 %v90, 8
    %v92 = vpop.permute.xlu0 %91
    %vm93 = vcmask 130112
    %94 = vst.msk [vmem:[#allocation0] sm:$0x1] %vm93, %v92
    %s96 = sshllo.u32 0, 1
    %v98 = vld [vmem:[#allocation0] sm:%s96]
    %s99 = sshllo.u32 0, 1
    %100 = vst [vmem:[%s1] sm:%s99] %v98

// kernel: res_cor_block_pallas.1
$region0: #{res_cor_block_pallas.1}
  #allocation0 [shape = 'u32[]', space=smem, size = 0x4, offset = 0x4, fixed_abs, tag = 'smem constant byte address 0x4 - core index']
  #allocation1 [shape = 'u32[144,128]{1,0:T(1,128)}', space=vmem, size = 0x12000, scoped, tag = 'internal scratch']
  #allocation2 [shape = 'bf16[18,256]{1,0:T(8,128)(2,1)}', space=vmem, size = 0x3000, scoped, tag = 'scratch operand']
  %s0 = inlined_call_operand.vmem [shape: bf16[2,18,128], index: 0, kind: input, shape index: {}]
  %s1 = inlined_call_operand.vmem [shape: bf16[4,128,128], index: 1, kind: input, shape index: {}]
  %s2 = inlined_call_operand.vmem [shape: bf16[3,256,128], index: 2, kind: input, shape index: {}]
  %s3 = inlined_call_operand.vmem [shape: f32[8,128], index: 3, kind: input, shape index: {}]
  %s4 = inlined_call_operand.vmem [shape: bf16[128,8], index: 4, kind: input, shape index: {}]
  %s5 = inlined_call_operand.vmem [shape: bf16[8,8], index: 5, kind: input, shape index: {}]
  %s6 = inlined_call_operand.vmem [shape: f32[2,8], index: 6, kind: input, shape index: {}]
  %s7 = inlined_call_operand.vmem [shape: bf16[8,128], index: 7, kind: input, shape index: {}]
  %s8 = inlined_call_operand.vmem [shape: bf16[128,128], index: 8, kind: input, shape index: {}]
  %s9 = inlined_call_operand.vmem [shape: f32[2,128], index: 9, kind: input, shape index: {}]
  %s10 = inlined_call_operand.vmem [shape: bf16[128,128], index: 10, kind: input, shape index: {}]
  %s11 = inlined_call_operand.vmem [shape: bf16[2,16,128], index: 11, kind: output, shape index: {}]
  %s12 = sld [smem:[#allocation0]]
  $region77: #{res_cor_block_pallas.1} parent=0
    _
  %s14 = ssub.s32 1, %s12
  %s15 = scalar_select 0, %s14, %s12
  loop: start=0, step=1, limit=4
  $region2: #{res_cor_block_pallas.1} parent=0 // loop_pre_header
    _
  $region3: #{res_cor_block_pallas.1} parent=0 // loop_header
    %s17 = sphi 0, %s21
    %p18 = scmp.ge.s32.totalorder %s17, 4
    %s27 = sphi 0, %s29
    %s30 = sphi 0, %s27
    %s31 = sphi 0, %s30
    %s47 = sphi 0, %s31
    %s51 = sphi 0, %s51
    %s53 = sphi 0, %s51
    %s54 = sphi 0, %s53
    %s68 = sphi 0, %s54
    %s72 = sphi 0, %s72
    %s74 = sphi 0, %s72
    %s75 = sphi 0, %s74
    %s89 = sphi 0, %s75
    %s93 = sphi 0, %s93
    %s95 = sphi 0, %s93
    %s96 = sphi 0, %s95
    %s110 = sphi 0, %s96
    %s114 = sphi 0, %s114
    %s116 = sphi 0, %s114
    %s117 = sphi 0, %s116
    %s131 = sphi 0, %s117
    %s135 = sphi 0, %s135
    %s137 = sphi 0, %s135
    %s138 = sphi 0, %s137
    %s152 = sphi 0, %s138
    %s156 = sphi 0, %s156
    %s158 = sphi 0, %s156
    %s159 = sphi 0, %s158
    %s173 = sphi 0, %s159
    %s177 = sphi 0, %s177
    %s179 = sphi 0, %s177
    %s180 = sphi 0, %s179
    %s194 = sphi 0, %s180
    %s198 = sphi 0, %s198
    %s200 = sphi 0, %s198
    %s201 = sphi 0, %s200
    %s215 = sphi 0, %s201
    %s219 = sphi 0, %s219
    %s221 = sphi 0, %s219
    %s222 = sphi 0, %s221
    %s236 = sphi 0, %s222
    %s240 = sphi 0, %s240
    %s242 = sphi 0, %s240
    %s243 = sphi 0, %s242
    %s257 = sphi 0, %s243
    %s263 = sphi 0, %s265
    %s266 = sphi 0, %s263
    %s267 = sphi 0, %s266
    %s283 = sphi 0, %s267
  $region4: #{res_cor_block_pallas.1} parent=0 // loop_header_branch
    %20 = sbr.rel (%p18) target = $region8
  $region5: #{res_cor_block_pallas.1} parent=0 // loop_body
    %s22 = ssub.s32 %s17, 1
    %s23 = ssub.s32 %s17, 2
    %s24 = sadd.s32 %s17, 1
    %s25 = ssub.s32 %s17, %s24
    %p26 = scmp.eq.s32.totalorder %s25, 0
    %s28 = sadd.s32 %s27, 1
    %s29 = scalar_select %p26, %s27, %s28
    %p32 = pneg %p26
    %p33 = scmp.eq.s32.totalorder %s17, 1
    %p34 = por %p32, %p33
    %p35 = scmp.ne.s32.totalorder %s27, %s30
    %p36 = scmp.eq.s32.totalorder %s17, 0
    %p37 = por %p35, %p36
    %p38 = scmp.ne.s32.totalorder %s27, %s30
    %p39 = scmp.eq.s32.totalorder %s22, 1
    %p40 = por %p38, %p39
    %p41 = scmp.ne.s32.totalorder %s30, %s31
    %p42 = scmp.eq.s32.totalorder %s22, 0
    %p43 = por %p41, %p42
    %p44 = scmp.ne.s32.totalorder %s30, %s31
    %p45 = scmp.eq.s32.totalorder %s23, 1
    %p46 = por %p44, %p45
    %p48 = scmp.ne.s32.totalorder %s31, %s47
    %p49 = scmp.eq.s32.totalorder %s23, 0
    %p50 = por %p48, %p49
    %s52 = sadd.s32 %s51, 1
    %p55 = scmp.eq.s32.totalorder %s17, 1
    %p56 = scmp.ne.s32.totalorder %s51, %s53
    %p57 = scmp.eq.s32.totalorder %s17, 0
    %p58 = por %p56, %p57
    %p59 = scmp.ne.s32.totalorder %s51, %s53
    %p60 = scmp.eq.s32.totalorder %s22, 1
    %p61 = por %p59, %p60
    %p62 = scmp.ne.s32.totalorder %s53, %s54
    %p63 = scmp.eq.s32.totalorder %s22, 0
    %p64 = por %p62, %p63
    %p65 = scmp.ne.s32.totalorder %s53, %s54
    %p66 = scmp.eq.s32.totalorder %s23, 1
    %p67 = por %p65, %p66
    %p69 = scmp.ne.s32.totalorder %s54, %s68
    %p70 = scmp.eq.s32.totalorder %s23, 0
    %p71 = por %p69, %p70
    %s73 = sadd.s32 %s72, 1
    %p76 = scmp.eq.s32.totalorder %s17, 1
    %p77 = scmp.ne.s32.totalorder %s72, %s74
    %p78 = scmp.eq.s32.totalorder %s17, 0
    %p79 = por %p77, %p78
    %p80 = scmp.ne.s32.totalorder %s72, %s74
    %p81 = scmp.eq.s32.totalorder %s22, 1
    %p82 = por %p80, %p81
    %p83 = scmp.ne.s32.totalorder %s74, %s75
    %p84 = scmp.eq.s32.totalorder %s22, 0
    %p85 = por %p83, %p84
    %p86 = scmp.ne.s32.totalorder %s74, %s75
    %p87 = scmp.eq.s32.totalorder %s23, 1
    %p88 = por %p86, %p87
    %p90 = scmp.ne.s32.totalorder %s75, %s89
    %p91 = scmp.eq.s32.totalorder %s23, 0
    %p92 = por %p90, %p91
    %s94 = sadd.s32 %s93, 1
    %p97 = scmp.eq.s32.totalorder %s17, 1
    %p98 = scmp.ne.s32.totalorder %s93, %s95
    %p99 = scmp.eq.s32.totalorder %s17, 0
    %p100 = por %p98, %p99
    %p101 = scmp.ne.s32.totalorder %s93, %s95
    %p102 = scmp.eq.s32.totalorder %s22, 1
    %p103 = por %p101, %p102
    %p104 = scmp.ne.s32.totalorder %s95, %s96
    %p105 = scmp.eq.s32.totalorder %s22, 0
    %p106 = por %p104, %p105
    %p107 = scmp.ne.s32.totalorder %s95, %s96
    %p108 = scmp.eq.s32.totalorder %s23, 1
    %p109 = por %p107, %p108
    %p111 = scmp.ne.s32.totalorder %s96, %s110
    %p112 = scmp.eq.s32.totalorder %s23, 0
    %p113 = por %p111, %p112
    %s115 = sadd.s32 %s114, 1
    %p118 = scmp.eq.s32.totalorder %s17, 1
    %p119 = scmp.ne.s32.totalorder %s114, %s116
    %p120 = scmp.eq.s32.totalorder %s17, 0
    %p121 = por %p119, %p120
    %p122 = scmp.ne.s32.totalorder %s114, %s116
    %p123 = scmp.eq.s32.totalorder %s22, 1
    %p124 = por %p122, %p123
    %p125 = scmp.ne.s32.totalorder %s116, %s117
    %p126 = scmp.eq.s32.totalorder %s22, 0
    %p127 = por %p125, %p126
    %p128 = scmp.ne.s32.totalorder %s116, %s117
    %p129 = scmp.eq.s32.totalorder %s23, 1
    %p130 = por %p128, %p129
    %p132 = scmp.ne.s32.totalorder %s117, %s131
    %p133 = scmp.eq.s32.totalorder %s23, 0
    %p134 = por %p132, %p133
    %s136 = sadd.s32 %s135, 1
    %p139 = scmp.eq.s32.totalorder %s17, 1
    %p140 = scmp.ne.s32.totalorder %s135, %s137
    %p141 = scmp.eq.s32.totalorder %s17, 0
    %p142 = por %p140, %p141
    %p143 = scmp.ne.s32.totalorder %s135, %s137
    %p144 = scmp.eq.s32.totalorder %s22, 1
    %p145 = por %p143, %p144
    %p146 = scmp.ne.s32.totalorder %s137, %s138
    %p147 = scmp.eq.s32.totalorder %s22, 0
    %p148 = por %p146, %p147
    %p149 = scmp.ne.s32.totalorder %s137, %s138
    %p150 = scmp.eq.s32.totalorder %s23, 1
    %p151 = por %p149, %p150
    %p153 = scmp.ne.s32.totalorder %s138, %s152
    %p154 = scmp.eq.s32.totalorder %s23, 0
    %p155 = por %p153, %p154
    %s157 = sadd.s32 %s156, 1
    %p160 = scmp.eq.s32.totalorder %s17, 1
    %p161 = scmp.ne.s32.totalorder %s156, %s158
    %p162 = scmp.eq.s32.totalorder %s17, 0
    %p163 = por %p161, %p162
    %p164 = scmp.ne.s32.totalorder %s156, %s158
    %p165 = scmp.eq.s32.totalorder %s22, 1
    %p166 = por %p164, %p165
    %p167 = scmp.ne.s32.totalorder %s158, %s159
    %p168 = scmp.eq.s32.totalorder %s22, 0
    %p169 = por %p167, %p168
    %p170 = scmp.ne.s32.totalorder %s158, %s159
    %p171 = scmp.eq.s32.totalorder %s23, 1
    %p172 = por %p170, %p171
    %p174 = scmp.ne.s32.totalorder %s159, %s173
    %p175 = scmp.eq.s32.totalorder %s23, 0
    %p176 = por %p174, %p175
    %s178 = sadd.s32 %s177, 1
    %p181 = scmp.eq.s32.totalorder %s17, 1
    %p182 = scmp.ne.s32.totalorder %s177, %s179
    %p183 = scmp.eq.s32.totalorder %s17, 0
    %p184 = por %p182, %p183
    %p185 = scmp.ne.s32.totalorder %s177, %s179
    %p186 = scmp.eq.s32.totalorder %s22, 1
    %p187 = por %p185, %p186
    %p188 = scmp.ne.s32.totalorder %s179, %s180
    %p189 = scmp.eq.s32.totalorder %s22, 0
    %p190 = por %p188, %p189
    %p191 = scmp.ne.s32.totalorder %s179, %s180
    %p192 = scmp.eq.s32.totalorder %s23, 1
    %p193 = por %p191, %p192
    %p195 = scmp.ne.s32.totalorder %s180, %s194
    %p196 = scmp.eq.s32.totalorder %s23, 0
    %p197 = por %p195, %p196
    %s199 = sadd.s32 %s198, 1
    %p202 = scmp.eq.s32.totalorder %s17, 1
    %p203 = scmp.ne.s32.totalorder %s198, %s200
    %p204 = scmp.eq.s32.totalorder %s17, 0
    %p205 = por %p203, %p204
    %p206 = scmp.ne.s32.totalorder %s198, %s200
    %p207 = scmp.eq.s32.totalorder %s22, 1
    %p208 = por %p206, %p207
    %p209 = scmp.ne.s32.totalorder %s200, %s201
    %p210 = scmp.eq.s32.totalorder %s22, 0
    %p211 = por %p209, %p210
    %p212 = scmp.ne.s32.totalorder %s200, %s201
    %p213 = scmp.eq.s32.totalorder %s23, 1
    %p214 = por %p212, %p213
    %p216 = scmp.ne.s32.totalorder %s201, %s215
    %p217 = scmp.eq.s32.totalorder %s23, 0
    %p218 = por %p216, %p217
    %s220 = sadd.s32 %s219, 1
    %p223 = scmp.eq.s32.totalorder %s17, 1
    %p224 = scmp.ne.s32.totalorder %s219, %s221
    %p225 = scmp.eq.s32.totalorder %s17, 0
    %p226 = por %p224, %p225
    %p227 = scmp.ne.s32.totalorder %s219, %s221
    %p228 = scmp.eq.s32.totalorder %s22, 1
    %p229 = por %p227, %p228
    %p230 = scmp.ne.s32.totalorder %s221, %s222
    %p231 = scmp.eq.s32.totalorder %s22, 0
    %p232 = por %p230, %p231
    %p233 = scmp.ne.s32.totalorder %s221, %s222
    %p234 = scmp.eq.s32.totalorder %s23, 1
    %p235 = por %p233, %p234
    %p237 = scmp.ne.s32.totalorder %s222, %s236
    %p238 = scmp.eq.s32.totalorder %s23, 0
    %p239 = por %p237, %p238
    %s241 = sadd.s32 %s240, 1
    %p244 = scmp.eq.s32.totalorder %s17, 1
    %p245 = scmp.ne.s32.totalorder %s240, %s242
    %p246 = scmp.eq.s32.totalorder %s17, 0
    %p247 = por %p245, %p246
    %p248 = scmp.ne.s32.totalorder %s240, %s242
    %p249 = scmp.eq.s32.totalorder %s22, 1
    %p250 = por %p248, %p249
    %p251 = scmp.ne.s32.totalorder %s242, %s243
    %p252 = scmp.eq.s32.totalorder %s22, 0
    %p253 = por %p251, %p252
    %p254 = scmp.ne.s32.totalorder %s242, %s243
    %p255 = scmp.eq.s32.totalorder %s23, 1
    %p256 = por %p254, %p255
    %p258 = scmp.ne.s32.totalorder %s243, %s257
    %p259 = scmp.eq.s32.totalorder %s23, 0
    %p260 = por %p258, %p259
    %s261 = ssub.s32 %s17, %s24
    %p262 = scmp.eq.s32.totalorder %s261, 0
    %s264 = sadd.s32 %s263, 1
    %s265 = scalar_select %p262, %s263, %s264
    %p268 = pneg %p262
    %p269 = scmp.eq.s32.totalorder %s17, 1
    %p270 = por %p268, %p269
    %p271 = scmp.ne.s32.totalorder %s263, %s266
    %p272 = scmp.eq.s32.totalorder %s17, 0
    %p273 = por %p271, %p272
    %p274 = scmp.ne.s32.totalorder %s263, %s266
    %p275 = scmp.eq.s32.totalorder %s22, 1
    %p276 = por %p274, %p275
    %p277 = scmp.ne.s32.totalorder %s266, %s267
    %p278 = scmp.eq.s32.totalorder %s22, 0
    %p279 = por %p277, %p278
    %p280 = scmp.ne.s32.totalorder %s266, %s267
    %p281 = scmp.eq.s32.totalorder %s23, 1
    %p282 = por %p280, %p281
    %p284 = scmp.ne.s32.totalorder %s267, %s283
    %p285 = scmp.eq.s32.totalorder %s23, 0
    %p286 = por %p284, %p285
    %p287 = scmp.le.s32.totalorder 1, %s17
    %p288 = scmp.lt.s32.totalorder %s17, 3
    %p289 = pnand %p287, %p288
    %p290 = pneg %p289
    // Predicated region
    $region9: #{res_cor_block_pallas.1} parent=5 // pred_check
      _
    $region10: #{res_cor_block_pallas.1} parent=5 // pred_check_branch
      %292 = sbr.rel (%p289) target = $region12
    $region11: #{res_cor_block_pallas.1} parent=5 // pred_region
      %s293 = ssub.s32 %s17, 1
      // Predicated region
      $region13: #{res_cor_block_pallas.1} parent=11 // pred_check
        %p294 = pneg %p64
      $region14: #{res_cor_block_pallas.1} parent=11 // pred_check_branch
        %296 = sbr.rel (%p294) target = $region16
      $region15: #{res_cor_block_pallas.1} parent=11 // pred_region
        _
      $region16: #{res_cor_block_pallas.1} parent=11 // pred_fallthru
        _
      // Predicated region
      $region17: #{res_cor_block_pallas.1} parent=11 // pred_check
        %p297 = pneg %p85
      $region18: #{res_cor_block_pallas.1} parent=11 // pred_check_branch
        %299 = sbr.rel (%p297) target = $region20
      $region19: #{res_cor_block_pallas.1} parent=11 // pred_region
        _
      $region20: #{res_cor_block_pallas.1} parent=11 // pred_fallthru
        _
      // Predicated region
      $region21: #{res_cor_block_pallas.1} parent=11 // pred_check
        %p300 = pneg %p106
      $region22: #{res_cor_block_pallas.1} parent=11 // pred_check_branch
        %302 = sbr.rel (%p300) target = $region24
      $region23: #{res_cor_block_pallas.1} parent=11 // pred_region
        _
      $region24: #{res_cor_block_pallas.1} parent=11 // pred_fallthru
        _
      // Predicated region
      $region25: #{res_cor_block_pallas.1} parent=11 // pred_check
        %p303 = pneg %p127
      $region26: #{res_cor_block_pallas.1} parent=11 // pred_check_branch
        %305 = sbr.rel (%p303) target = $region28
      $region27: #{res_cor_block_pallas.1} parent=11 // pred_region
        _
      $region28: #{res_cor_block_pallas.1} parent=11 // pred_fallthru
        _
      // Predicated region
      $region29: #{res_cor_block_pallas.1} parent=11 // pred_check
        %p306 = pneg %p148
      $region30: #{res_cor_block_pallas.1} parent=11 // pred_check_branch
        %308 = sbr.rel (%p306) target = $region32
      $region31: #{res_cor_block_pallas.1} parent=11 // pred_region
        _
      $region32: #{res_cor_block_pallas.1} parent=11 // pred_fallthru
        _
      // Predicated region
      $region33: #{res_cor_block_pallas.1} parent=11 // pred_check
        %p309 = pneg %p169
      $region34: #{res_cor_block_pallas.1} parent=11 // pred_check_branch
        %311 = sbr.rel (%p309) target = $region36
      $region35: #{res_cor_block_pallas.1} parent=11 // pred_region
        _
      $region36: #{res_cor_block_pallas.1} parent=11 // pred_fallthru
        _
      // Predicated region
      $region37: #{res_cor_block_pallas.1} parent=11 // pred_check
        %p312 = pneg %p190
      $region38: #{res_cor_block_pallas.1} parent=11 // pred_check_branch
        %314 = sbr.rel (%p312) target = $region40
      $region39: #{res_cor_block_pallas.1} parent=11 // pred_region
        _
      $region40: #{res_cor_block_pallas.1} parent=11 // pred_fallthru
        _
      // Predicated region
      $region41: #{res_cor_block_pallas.1} parent=11 // pred_check
        %p315 = pneg %p211
      $region42: #{res_cor_block_pallas.1} parent=11 // pred_check_branch
        %317 = sbr.rel (%p315) target = $region44
      $region43: #{res_cor_block_pallas.1} parent=11 // pred_region
        _
      $region44: #{res_cor_block_pallas.1} parent=11 // pred_fallthru
        _
      // Predicated region
      $region45: #{res_cor_block_pallas.1} parent=11 // pred_check
        %p318 = pneg %p232
      $region46: #{res_cor_block_pallas.1} parent=11 // pred_check_branch
        %320 = sbr.rel (%p318) target = $region48
      $region47: #{res_cor_block_pallas.1} parent=11 // pred_region
        _
      $region48: #{res_cor_block_pallas.1} parent=11 // pred_fallthru
        _
      // Predicated region
      $region49: #{res_cor_block_pallas.1} parent=11 // pred_check
        %p321 = pneg %p253
      $region50: #{res_cor_block_pallas.1} parent=11 // pred_check_branch
        %323 = sbr.rel (%p321) target = $region52
      $region51: #{res_cor_block_pallas.1} parent=11 // pred_region
        _
      $region52: #{res_cor_block_pallas.1} parent=11 // pred_fallthru
        _
    $region12: #{res_cor_block_pallas.1} parent=5 // pred_fallthru
      _
    %p324 = scmp.lt.s32.totalorder %s17, 2
    // Predicated region
    $region53: #{res_cor_block_pallas.1} parent=5 // pred_check
      %p325 = pneg %p324
    $region54: #{res_cor_block_pallas.1} parent=5 // pred_check_branch
      %327 = sbr.rel (%p325) target = $region56
    $region55: #{res_cor_block_pallas.1} parent=5 // pred_region
      // Predicated region
      $region57: #{res_cor_block_pallas.1} parent=55 // pred_check
        %p328 = pneg %p37
      $region58: #{res_cor_block_pallas.1} parent=55 // pred_check_branch
        %330 = sbr.rel (%p328) target = $region60
      $region59: #{res_cor_block_pallas.1} parent=55 // pred_region
        %p331 = scmp.lt.s32.totalorder %s17, 1
        %s332 = scalar_select %p331, %s17, 1
        %s333 = smul.addr %s332, 3
        %s334 = smul.addr %s333, 4
        %s335 = scalar_lea.vmem %s0, %s334
      $region60: #{res_cor_block_pallas.1} parent=55 // pred_fallthru
        _
    $region56: #{res_cor_block_pallas.1} parent=5 // pred_fallthru
      _
    %p336 = scmp.le.s32.totalorder 1, %s17
    %p337 = scmp.lt.s32.totalorder %s17, 3
    %p338 = pnand %p336, %p337
    %p339 = pneg %p338
    // Predicated region
    $region61: #{res_cor_block_pallas.1} parent=5 // pred_check
      _
    $region62: #{res_cor_block_pallas.1} parent=5 // pred_check_branch
      %341 = sbr.rel (%p338) target = $region64
    $region63: #{res_cor_block_pallas.1} parent=5 // pred_region
      %s342 = ssub.s32 %s17, 1
      %p343 = scmp.lt.s32.totalorder %s22, 1
      %s344 = scalar_select %p343, %s22, 1
      %s345 = smul.addr %s344, 3
      %s346 = smul.addr %s345, 4
      %s347 = scalar_lea.vmem %s0, %s346
      %p348 = pneg %p43
      %p349 = pneg %p40
      %p350 = pneg %p64
      %p351 = pneg %p61
      %p352 = pneg %p85
      %p353 = pneg %p82
      %p354 = pneg %p106
      %p355 = pneg %p103
      %p356 = pneg %p127
      %p357 = pneg %p124
      %p358 = pneg %p148
      %p359 = pneg %p145
      %p360 = pneg %p169
      %p361 = pneg %p166
      %p362 = pneg %p190
      %p363 = pneg %p187
      %p364 = pneg %p211
      %p365 = pneg %p208
      %p366 = pneg %p232
      %p367 = pneg %p229
      %p368 = pneg %p253
      %p369 = pneg %p250
      %p370 = pneg %p279
      %p371 = pneg %p276
      %p372 = scmp.lt.s32.totalorder %s22, 1
      %s373 = scalar_select %p372, %s22, 1
      %s374 = smul.addr %s373, 2
      %s375 = smul.addr %s374, 4
      %s376 = scalar_lea.vmem %s11, %s375
      %p377 = scmp.lt.s32.totalorder %s22, 1
      %s378 = scalar_select %p377, %s22, 1
      %s379 = smul.addr %s378, 3
      %s380 = smul.addr %s379, 4
      %s381 = scalar_lea.vmem %s0, %s380
      %p382 = scmp.lt.s32.totalorder %s22, 1
      %s383 = scalar_select %p382, %s22, 1
      %s384 = smul.addr %s383, 2
      %s385 = smul.addr %s384, 4
      %s386 = scalar_lea.vmem %s11, %s385
      %v388 = vld [vmem:[%s381] sm:$0xf]
      %v389 = vld [vmem:[%s381 + $0x4] sm:$0xf]
      %v390 = vld [vmem:[%s381 + $0x8] sm:$0x1]
      %v391 = vld [vmem:[%s3] sm:$0xff]
      %v392 = vld [vmem:[%s1] sm:$0xf]
      %v393 = vld [vmem:[%s1 + $0x4] sm:$0xf]
      %v394 = vld [vmem:[%s1 + $0x8] sm:$0xf]
      %v395 = vld [vmem:[%s1 + $0xc] sm:$0xf]
      %v396 = vld [vmem:[%s1 + $0x10] sm:$0xf]
      %v397 = vld [vmem:[%s1 + $0x14] sm:$0xf]
      %v398 = vld [vmem:[%s1 + $0x18] sm:$0xf]
      %v399 = vld [vmem:[%s1 + $0x1c] sm:$0xf]
      %v400 = vld [vmem:[%s1 + $0x20] sm:$0xf]
      %v401 = vld [vmem:[%s1 + $0x24] sm:$0xf]
      %v402 = vld [vmem:[%s1 + $0x28] sm:$0xf]
      %v403 = vld [vmem:[%s1 + $0x2c] sm:$0xf]
      %v404 = vld [vmem:[%s1 + $0x30] sm:$0xf]
      %v405 = vld [vmem:[%s1 + $0x34] sm:$0xf]
      %v406 = vld [vmem:[%s1 + $0x38] sm:$0xf]
      %v407 = vld [vmem:[%s1 + $0x3c] sm:$0xf]
      %s408 = scalar_lea.vmem %s1, 64
      %v409 = vld [vmem:[%s408] sm:$0xf]
      %v410 = vld [vmem:[%s408 + $0x4] sm:$0xf]
      %v411 = vld [vmem:[%s408 + $0x8] sm:$0xf]
      %v412 = vld [vmem:[%s408 + $0xc] sm:$0xf]
      %v413 = vld [vmem:[%s408 + $0x10] sm:$0xf]
      %v414 = vld [vmem:[%s408 + $0x14] sm:$0xf]
      %v415 = vld [vmem:[%s408 + $0x18] sm:$0xf]
      %v416 = vld [vmem:[%s408 + $0x1c] sm:$0xf]
      %v417 = vld [vmem:[%s408 + $0x20] sm:$0xf]
      %v418 = vld [vmem:[%s408 + $0x24] sm:$0xf]
      %v419 = vld [vmem:[%s408 + $0x28] sm:$0xf]
      %v420 = vld [vmem:[%s408 + $0x2c] sm:$0xf]
      %v421 = vld [vmem:[%s408 + $0x30] sm:$0xf]
      %v422 = vld [vmem:[%s408 + $0x34] sm:$0xf]
      %v423 = vld [vmem:[%s408 + $0x38] sm:$0xf]
      %v424 = vld [vmem:[%s408 + $0x3c] sm:$0xf]
      %v428 = vunpack.c.l.b16 %v388
      %v429 = vunpack.c.l.b16 %v389
      %v430 = vunpack.c.l.b16 %v390
      %v431 = vpack.c.b16 %v429, %v428
      %v432 = vpack.c.b16 %v430, %v430
      %vm433 = vsmask.f32 7424
      %v435 = vshrl.u32 %v431, 16
      %v437 = vshll.u32 %v431, 16
      %v439 = vrot.slane %v437, 1
      %v440 = vor.u32 %v435, %v439
      %v442 = vshll.u32 %v432, 16
      %v444 = vrot.slane %v442, 1
      %v445 = vsel %vm433, %v440, %v444
      %v463 = vunpack.c.l.b16 %v409
      %v464 = vunpack.c.l.b16 %v410
      %v465 = vunpack.c.l.b16 %v411
      %v466 = vunpack.c.l.b16 %v412
      %v467 = vunpack.c.l.b16 %v413
      %v468 = vunpack.c.l.b16 %v414
      %v469 = vunpack.c.l.b16 %v415
      %v470 = vunpack.c.l.b16 %v416
      %v471 = vunpack.c.l.b16 %v417
      %v472 = vunpack.c.l.b16 %v418
      %v473 = vunpack.c.l.b16 %v419
      %v474 = vunpack.c.l.b16 %v420
      %v475 = vunpack.c.l.b16 %v421
      %v476 = vunpack.c.l.b16 %v422
      %v477 = vunpack.c.l.b16 %v423
      %v478 = vunpack.c.l.b16 %v424
      %v479 = vpack.c.b16 %v464, %v463
      %v480 = vpack.c.b16 %v466, %v465
      %v481 = vpack.c.b16 %v468, %v467
      %v482 = vpack.c.b16 %v470, %v469
      %v483 = vpack.c.b16 %v472, %v471
      %v484 = vpack.c.b16 %v474, %v473
      %v485 = vpack.c.b16 %v476, %v475
      %v486 = vpack.c.b16 %v478, %v477
      %495 = vmatprep.subr.bf16.mxu0 0
      %496 = vmatpush1.bf16.msra.mxu0 %v479
      %497 = vmatprep.subr.bf16.mxu0 0
      %498 = vmatpush1.bf16.msra.mxu0 %v480
      %499 = vmatprep.subr.bf16.mxu0 0
      %500 = vmatpush1.bf16.msra.mxu0 %v481
      %501 = vmatprep.subr.bf16.mxu0 0
      %502 = vmatpush1.bf16.msra.mxu0 %v482
      %503 = vmatprep.subr.bf16.mxu0 0
      %504 = vmatpush1.bf16.msra.mxu0 %v483
      %505 = vmatprep.subr.bf16.mxu0 0
      %506 = vmatpush1.bf16.msra.mxu0 %v484
      %507 = vmatprep.subr.bf16.mxu0 0
      %508 = vmatpush1.bf16.msra.mxu0 %v485
      %509 = vmatprep.subr.bf16.mxu0 0
      %510 = vmatpush1.bf16.msra.mxu0 %v486
      %511 = vmatprep.subr.bf16.mxu0 0
      %512 = vmatpush1.bf16.msra.mxu0 0
      %513 = vmatprep.subr.bf16.mxu0 0
      %514 = vmatpush1.bf16.msra.mxu0 0
      %515 = vmatprep.subr.bf16.mxu0 0
      %516 = vmatpush1.bf16.msra.mxu0 0
      %517 = vmatprep.subr.bf16.mxu0 0
      %518 = vmatpush1.bf16.msra.mxu0 0
      %519 = vmatprep.subr.bf16.mxu0 0
      %520 = vmatpush1.bf16.msra.mxu0 0
      %521 = vmatprep.subr.bf16.mxu0 0
      %522 = vmatpush1.bf16.msra.mxu0 0
      %523 = vmatprep.subr.bf16.mxu0 0
      %524 = vmatpush1.bf16.msra.mxu0 0
      %525 = vmatprep.subr.bf16.mxu0 0
      %526 = vmatpush1.bf16.msra.mxu0 0
      %527 = vmatprep.mubr.bf16.mxu0 0
      %528 = vmatmul.mubr.bf16.gmra.mrb[0].mxu0 %v445
      %v529 = vpop.f32.mrb[0].mxu0
      %v530 = vadd.f32 0.0, %v529
      %v531 = vpop.f32.mrb[0].mxu0
      %v532 = vpop.f32.mrb[0].mxu0
      %v533 = vadd.f32 0.0, %v532
      %v534 = vpop.f32.mrb[0].mxu0
      %535 = vdwg.mxu0
      %v553 = vunpack.c.l.b16 %v392
      %v554 = vunpack.c.l.b16 %v393
      %v555 = vunpack.c.l.b16 %v394
      %v556 = vunpack.c.l.b16 %v395
      %v557 = vunpack.c.l.b16 %v396
      %v558 = vunpack.c.l.b16 %v397
      %v559 = vunpack.c.l.b16 %v398
      %v560 = vunpack.c.l.b16 %v399
      %v561 = vunpack.c.l.b16 %v400
      %v562 = vunpack.c.l.b16 %v401
      %v563 = vunpack.c.l.b16 %v402
      %v564 = vunpack.c.l.b16 %v403
      %v565 = vunpack.c.l.b16 %v404
      %v566 = vunpack.c.l.b16 %v405
      %v567 = vunpack.c.l.b16 %v406
      %v568 = vunpack.c.l.b16 %v407
      %v569 = vpack.c.b16 %v554, %v553
      %v570 = vpack.c.b16 %v556, %v555
      %v571 = vpack.c.b16 %v558, %v557
      %v572 = vpack.c.b16 %v560, %v559
      %v573 = vpack.c.b16 %v562, %v561
      %v574 = vpack.c.b16 %v564, %v563
      %v575 = vpack.c.b16 %v566, %v565
      %v576 = vpack.c.b16 %v568, %v567
      %585 = vmatprep.subr.bf16.mxu0 0
      %586 = vmatpush1.bf16.msra.mxu0 %v569
      %587 = vmatprep.subr.bf16.mxu0 0
      %588 = vmatpush1.bf16.msra.mxu0 %v570
      %589 = vmatprep.subr.bf16.mxu0 0
      %590 = vmatpush1.bf16.msra.mxu0 %v571
      %591 = vmatprep.subr.bf16.mxu0 0
      %592 = vmatpush1.bf16.msra.mxu0 %v572
      %593 = vmatprep.subr.bf16.mxu0 0
      %594 = vmatpush1.bf16.msra.mxu0 %v573
      %595 = vmatprep.subr.bf16.mxu0 0
      %596 = vmatpush1.bf16.msra.mxu0 %v574
      %597 = vmatprep.subr.bf16.mxu0 0
      %598 = vmatpush1.bf16.msra.mxu0 %v575
      %599 = vmatprep.subr.bf16.mxu0 0
      %600 = vmatpush1.bf16.msra.mxu0 %v576
      %601 = vmatprep.subr.bf16.mxu0 0
      %602 = vmatpush1.bf16.msra.mxu0 0
      %603 = vmatprep.subr.bf16.mxu0 0
      %604 = vmatpush1.bf16.msra.mxu0 0
      %605 = vmatprep.subr.bf16.mxu0 0
      %606 = vmatpush1.bf16.msra.mxu0 0
      %607 = vmatprep.subr.bf16.mxu0 0
      %608 = vmatpush1.bf16.msra.mxu0 0
      %609 = vmatprep.subr.bf16.mxu0 0
      %610 = vmatpush1.bf16.msra.mxu0 0
      %611 = vmatprep.subr.bf16.mxu0 0
      %612 = vmatpush1.bf16.msra.mxu0 0
      %613 = vmatprep.subr.bf16.mxu0 0
      %614 = vmatpush1.bf16.msra.mxu0 0
      %615 = vmatprep.subr.bf16.mxu0 0
      %616 = vmatpush1.bf16.msra.mxu0 0
      %617 = vmatprep.mubr.bf16.mxu0 0
      %618 = vmatmul.mubr.bf16.gmra.mrb[0].mxu0 %v431
      %v619 = vpop.f32.mrb[0].mxu0
      %v620 = vadd.f32 %v530, %v619
      %v621 = vpop.f32.mrb[0].mxu0
      %v622 = vpop.f32.mrb[0].mxu0
      %v623 = vadd.f32 %v533, %v622
      %v624 = vpop.f32.mrb[0].mxu0
      %625 = vdwg.mxu0
      %s626 = scalar_lea.vmem %s1, 128
      %v627 = vld [vmem:[%s626] sm:$0xf]
      %v628 = vld [vmem:[%s626 + $0x4] sm:$0xf]
      %v629 = vld [vmem:[%s626 + $0x8] sm:$0xf]
      %v630 = vld [vmem:[%s626 + $0xc] sm:$0xf]
      %v631 = vld [vmem:[%s626 + $0x10] sm:$0xf]
      %v632 = vld [vmem:[%s626 + $0x14] sm:$0xf]
      %v633 = vld [vmem:[%s626 + $0x18] sm:$0xf]
      %v634 = vld [vmem:[%s626 + $0x1c] sm:$0xf]
      %v635 = vld [vmem:[%s626 + $0x20] sm:$0xf]
      %v636 = vld [vmem:[%s626 + $0x24] sm:$0xf]
      %v637 = vld [vmem:[%s626 + $0x28] sm:$0xf]
      %v638 = vld [vmem:[%s626 + $0x2c] sm:$0xf]
      %v639 = vld [vmem:[%s626 + $0x30] sm:$0xf]
      %v640 = vld [vmem:[%s626 + $0x34] sm:$0xf]
      %v641 = vld [vmem:[%s626 + $0x38] sm:$0xf]
      %v642 = vld [vmem:[%s626 + $0x3c] sm:$0xf]
      %vm643 = vcmask 1046528
      %v644 = vrot.slane %v431, 1
      %v645 = vrot.slane %v432, 1
      %v646 = vsel %vm643, %v644, %v645
      %v664 = vunpack.c.l.b16 %v627
      %v665 = vunpack.c.l.b16 %v628
      %v666 = vunpack.c.l.b16 %v629
      %v667 = vunpack.c.l.b16 %v630
      %v668 = vunpack.c.l.b16 %v631
      %v669 = vunpack.c.l.b16 %v632
      %v670 = vunpack.c.l.b16 %v633
      %v671 = vunpack.c.l.b16 %v634
      %v672 = vunpack.c.l.b16 %v635
      %v673 = vunpack.c.l.b16 %v636
      %v674 = vunpack.c.l.b16 %v637
      %v675 = vunpack.c.l.b16 %v638
      %v676 = vunpack.c.l.b16 %v639
      %v677 = vunpack.c.l.b16 %v640
      %v678 = vunpack.c.l.b16 %v641
      %v679 = vunpack.c.l.b16 %v642
      %v680 = vpack.c.b16 %v665, %v664
      %v681 = vpack.c.b16 %v667, %v666
      %v682 = vpack.c.b16 %v669, %v668
      %v683 = vpack.c.b16 %v671, %v670
      %v684 = vpack.c.b16 %v673, %v672
      %v685 = vpack.c.b16 %v675, %v674
      %v686 = vpack.c.b16 %v677, %v676
      %v687 = vpack.c.b16 %v679, %v678
      %696 = vmatprep.subr.bf16.mxu0 0
      %697 = vmatpush1.bf16.msra.mxu0 %v680
      %698 = vmatprep.subr.bf16.mxu0 0
      %699 = vmatpush1.bf16.msra.mxu0 %v681
      %700 = vmatprep.subr.bf16.mxu0 0
      %701 = vmatpush1.bf16.msra.mxu0 %v682
      %702 = vmatprep.subr.bf16.mxu0 0
      %703 = vmatpush1.bf16.msra.mxu0 %v683
      %704 = vmatprep.subr.bf16.mxu0 0
      %705 = vmatpush1.bf16.msra.mxu0 %v684
      %706 = vmatprep.subr.bf16.mxu0 0
      %707 = vmatpush1.bf16.msra.mxu0 %v685
      %708 = vmatprep.subr.bf16.mxu0 0
      %709 = vmatpush1.bf16.msra.mxu0 %v686
      %710 = vmatprep.subr.bf16.mxu0 0
      %711 = vmatpush1.bf16.msra.mxu0 %v687
      %712 = vmatprep.subr.bf16.mxu0 0
      %713 = vmatpush1.bf16.msra.mxu0 0
      %714 = vmatprep.subr.bf16.mxu0 0
      %715 = vmatpush1.bf16.msra.mxu0 0
      %716 = vmatprep.subr.bf16.mxu0 0
      %717 = vmatpush1.bf16.msra.mxu0 0
      %718 = vmatprep.subr.bf16.mxu0 0
      %719 = vmatpush1.bf16.msra.mxu0 0
      %720 = vmatprep.subr.bf16.mxu0 0
      %721 = vmatpush1.bf16.msra.mxu0 0
      %722 = vmatprep.subr.bf16.mxu0 0
      %723 = vmatpush1.bf16.msra.mxu0 0
      %724 = vmatprep.subr.bf16.mxu0 0
      %725 = vmatpush1.bf16.msra.mxu0 0
      %726 = vmatprep.subr.bf16.mxu0 0
      %727 = vmatpush1.bf16.msra.mxu0 0
      %728 = vmatprep.mubr.bf16.mxu0 0
      %729 = vmatmul.mubr.bf16.gmra.mrb[0].mxu0 %v646
      %v730 = vpop.f32.mrb[0].mxu0
      %v731 = vadd.f32 0.0, %v730
      %v732 = vpop.f32.mrb[0].mxu0
      %v733 = vpop.f32.mrb[0].mxu0
      %v734 = vadd.f32 0.0, %v733
      %v735 = vpop.f32.mrb[0].mxu0
      %736 = vdwg.mxu0
      %v737 = vadd.f32 %v620, %v731
      %v738 = vadd.f32 %v623, %v734
      %v739 = vlaneseq
      %v740 = vshrl.u32 %v739, 7
      %v741 = vsub.s32 0, %v740
      %v742 = vrot.slane %v391, %v741
      %v743 = vmul.f32 %v737, %v742
      %v744 = vmul.f32 %v738, %v742
      %v745 = vlaneseq
      %v746 = vshrl.u32 %v745, 7
      %v747 = vsub.s32 1, %v746
      %v748 = vrot.slane %v391, %v747
      %v749 = vadd.f32 %v743, %v748
      %v750 = vadd.f32 %v744, %v748
      %v751 = vmax.f32 %v749, 0.0
      %v752 = vmax.f32 %v750, 0.0
      %s753 = scalar_lea.vmem %s1, 192
      %v754 = vld [vmem:[%s753] sm:$0xf]
      %v755 = vld [vmem:[%s753 + $0x4] sm:$0xf]
      %v756 = vld [vmem:[%s753 + $0x8] sm:$0xf]
      %v757 = vld [vmem:[%s753 + $0xc] sm:$0xf]
      %v758 = vld [vmem:[%s753 + $0x10] sm:$0xf]
      %v759 = vld [vmem:[%s753 + $0x14] sm:$0xf]
      %v760 = vld [vmem:[%s753 + $0x18] sm:$0xf]
      %v761 = vld [vmem:[%s753 + $0x1c] sm:$0xf]
      %v762 = vld [vmem:[%s753 + $0x20] sm:$0xf]
      %v763 = vld [vmem:[%s753 + $0x24] sm:$0xf]
      %v764 = vld [vmem:[%s753 + $0x28] sm:$0xf]
      %v765 = vld [vmem:[%s753 + $0x2c] sm:$0xf]
      %v766 = vld [vmem:[%s753 + $0x30] sm:$0xf]
      %v767 = vld [vmem:[%s753 + $0x34] sm:$0xf]
      %v768 = vld [vmem:[%s753 + $0x38] sm:$0xf]
      %v769 = vld [vmem:[%s753 + $0x3c] sm:$0xf]
      %v786 = vunpack.c.l.b16 %v754
      %v787 = vunpack.c.l.b16 %v755
      %v788 = vunpack.c.l.b16 %v756
      %v789 = vunpack.c.l.b16 %v757
      %v790 = vunpack.c.l.b16 %v758
      %v791 = vunpack.c.l.b16 %v759
      %v792 = vunpack.c.l.b16 %v760
      %v793 = vunpack.c.l.b16 %v761
      %v794 = vunpack.c.l.b16 %v762
      %v795 = vunpack.c.l.b16 %v763
      %v796 = vunpack.c.l.b16 %v764
      %v797 = vunpack.c.l.b16 %v765
      %v798 = vunpack.c.l.b16 %v766
      %v799 = vunpack.c.l.b16 %v767
      %v800 = vunpack.c.l.b16 %v768
      %v801 = vunpack.c.l.b16 %v769
      %v802 = vpack.c.b16 %v787, %v786
      %v803 = vpack.c.b16 %v789, %v788
      %v804 = vpack.c.b16 %v791, %v790
      %v805 = vpack.c.b16 %v793, %v792
      %v806 = vpack.c.b16 %v795, %v794
      %v807 = vpack.c.b16 %v797, %v796
      %v808 = vpack.c.b16 %v799, %v798
      %v809 = vpack.c.b16 %v801, %v800
      %818 = vmatprep.subr.bf16.mxu0 0
      %819 = vmatpush1.bf16.msra.mxu0 %v802
      %820 = vmatprep.subr.bf16.mxu0 0
      %821 = vmatpush1.bf16.msra.mxu0 %v803
      %822 = vmatprep.subr.bf16.mxu0 0
      %823 = vmatpush1.bf16.msra.mxu0 %v804
      %824 = vmatprep.subr.bf16.mxu0 0
      %825 = vmatpush1.bf16.msra.mxu0 %v805
      %826 = vmatprep.subr.bf16.mxu0 0
      %827 = vmatpush1.bf16.msra.mxu0 %v806
      %828 = vmatprep.subr.bf16.mxu0 0
      %829 = vmatpush1.bf16.msra.mxu0 %v807
      %830 = vmatprep.subr.bf16.mxu0 0
      %831 = vmatpush1.bf16.msra.mxu0 %v808
      %832 = vmatprep.subr.bf16.mxu0 0
      %833 = vmatpush1.bf16.msra.mxu0 %v809
      %834 = vmatprep.subr.bf16.mxu0 0
      %835 = vmatpush1.bf16.msra.mxu0 0
      %836 = vmatprep.subr.bf16.mxu0 0
      %837 = vmatpush1.bf16.msra.mxu0 0
      %838 = vmatprep.subr.bf16.mxu0 0
      %839 = vmatpush1.bf16.msra.mxu0 0
      %840 = vmatprep.subr.bf16.mxu0 0
      %841 = vmatpush1.bf16.msra.mxu0 0
      %842 = vmatprep.subr.bf16.mxu0 0
      %843 = vmatpush1.bf16.msra.mxu0 0
      %844 = vmatprep.subr.bf16.mxu0 0
      %845 = vmatpush1.bf16.msra.mxu0 0
      %846 = vmatprep.subr.bf16.mxu0 0
      %847 = vmatpush1.bf16.msra.mxu0 0
      %848 = vmatprep.subr.bf16.mxu0 0
      %849 = vmatpush1.bf16.msra.mxu0 0
      %850 = vmatprep.mubr.bf16.mxu0 0
      %851 = vmatmul.mubr.bf16.gmra.mrb[0].mxu0 %v445
      %v852 = vpop.f32.mrb[0].mxu0
      %v853 = vadd.f32 0.0, %v852
      %v854 = vpop.f32.mrb[0].mxu0
      %v855 = vpop.f32.mrb[0].mxu0
      %v856 = vadd.f32 0.0, %v855
      %v857 = vpop.f32.mrb[0].mxu0
      %858 = vdwg.mxu0
      %v859 = vlaneseq
      %v860 = vshrl.u32 %v859, 7
      %v861 = vsub.s32 4, %v860
      %v862 = vrot.slane %v391, %v861
      %v863 = vmul.f32 %v853, %v862
      %v864 = vmul.f32 %v856, %v862
      %v865 = vlaneseq
      %v866 = vshrl.u32 %v865, 7
      %v867 = vsub.s32 5, %v866
      %v868 = vrot.slane %v391, %v867
      %v869 = vadd.f32 %v863, %v868
      %v870 = vadd.f32 %v864, %v868
      %871 = vst [vmem:[#allocation2] sm:$0xff] 0
      %872 = vst [vmem:[#allocation2 + $0x8] sm:$0xff] 0
      %873 = vst [vmem:[#allocation2 + $0x10] sm:$0x11] 0
      %v874 = vpack.c.bf16 %v752, %v751
      %v876 = vunpack.c.l.b16 %v874
      %v877 = vunpack.c.h.b16 %v874
      %v878 = vpack.c.b16 %v876, %v876
      %v879 = vpack.c.b16 %v877, %v877
      %vm880 = vsmask.f32 256
      %vm881 = vsmask.f32 4368
      %vm882 = vmor %vm880, %vm881
      %v884 = vshrl.u32 %v878, 16
      %v886 = vrot.slane %v884, 7
      %v887 = vshll.u32 %v878, 16
      %v889 = vor.u32 %v886, %v887
      %v890 = vrot.slane %v886, 4
      %v892 = vshrl.u32 %v879, 16
      %v894 = vrot.slane %v892, 7
      %v895 = vshll.u32 %v879, 16
      %v897 = vor.u32 %v894, %v895
      %v898 = vsel %vm882, %v890, %v897
      %v899 = vrot.slane %v894, 4
      %900 = vrot.lane.b32.xlu0 %v889, 8
      %v901 = vpop.permute.xlu0 %900
      %902 = vrot.lane.b32.xlu0 %v898, 8
      %v903 = vpop.permute.xlu0 %902
      %904 = vrot.lane.b32.xlu0 %v899, 8
      %v905 = vpop.permute.xlu0 %904
      %v906 = vrot.slane %v901, 4
      %v907 = vrot.slane %v903, 4
      %v908 = vrot.slane %v905, 4
      %vm909 = vcmask 64512
      %v910 = vsel %vm909, %v906, %v901
      %v911 = vsel %vm909, %v907, %v903
      %v912 = vsel %vm909, %v908, %v905
      %vm916 = vcmask 1043520
      %vm917 = vsmask.f32 7938
      %vm918 = vmand %vm916, %vm917
      %vm919 = vcmask 64516
      %vm920 = vsmask.f32 7954
      %vm921 = vmand %vm919, %vm920
      %vm922 = vmor %vm921, %vm918
      %v923 = vld [vmem:[#allocation2] sm:$0xff]
      %v924 = vsel %vm922, %v910, %v923
      %925 = vst [vmem:[#allocation2] sm:$0xff] %v924
      %vm926 = vcmask 1043520
      %vm927 = vcmask 64516
      %vm928 = vmor %vm927, %vm926
      %929 = vst.msk [vmem:[#allocation2 + $0x8] sm:$0xff] %vm928, %v911
      %vm930 = vcmask 1040448
      %vm931 = vmand %vm930, %vm880
      %vm932 = vcmask 61444
      %vm933 = vsmask.f32 4352
      %vm934 = vmand %vm932, %vm933
      %vm935 = vmor %vm934, %vm931
      %v936 = vld [vmem:[#allocation2 + $0x10] sm:$0x11]
      %v937 = vsel %vm935, %v912, %v936
      %938 = vst [vmem:[#allocation2 + $0x10] sm:$0x11] %v937
      %v939 = vld [vmem:[#allocation2] sm:$0xff]
      %v940 = vld [vmem:[#allocation2 + $0x8] sm:$0xff]
      %v941 = vld [vmem:[%s2] sm:$0xf]
      %v942 = vld [vmem:[%s2 + $0x4] sm:$0xf]
      %v943 = vld [vmem:[%s2 + $0x8] sm:$0xf]
      %v944 = vld [vmem:[%s2 + $0xc] sm:$0xf]
      %v945 = vld [vmem:[%s2 + $0x10] sm:$0xf]
      %v946 = vld [vmem:[%s2 + $0x14] sm:$0xf]
      %v947 = vld [vmem:[%s2 + $0x18] sm:$0xf]
      %v948 = vld [vmem:[%s2 + $0x1c] sm:$0xf]
      %v949 = vld [vmem:[%s2 + $0x20] sm:$0xf]
      %v950 = vld [vmem:[%s2 + $0x24] sm:$0xf]
      %v951 = vld [vmem:[%s2 + $0x28] sm:$0xf]
      %v952 = vld [vmem:[%s2 + $0x2c] sm:$0xf]
      %v953 = vld [vmem:[%s2 + $0x30] sm:$0xf]
      %v954 = vld [vmem:[%s2 + $0x34] sm:$0xf]
      %v955 = vld [vmem:[%s2 + $0x38] sm:$0xf]
      %v956 = vld [vmem:[%s2 + $0x3c] sm:$0xf]
      %v957 = vld [vmem:[%s2 + $0x40] sm:$0xf]
      %v958 = vld [vmem:[%s2 + $0x44] sm:$0xf]
      %v959 = vld [vmem:[%s2 + $0x48] sm:$0xf]
      %v960 = vld [vmem:[%s2 + $0x4c] sm:$0xf]
      %v961 = vld [vmem:[%s2 + $0x50] sm:$0xf]
      %v962 = vld [vmem:[%s2 + $0x54] sm:$0xf]
      %v963 = vld [vmem:[%s2 + $0x58] sm:$0xf]
      %v964 = vld [vmem:[%s2 + $0x5c] sm:$0xf]
      %v965 = vld [vmem:[%s2 + $0x60] sm:$0xf]
      %v966 = vld [vmem:[%s2 + $0x64] sm:$0xf]
      %v967 = vld [vmem:[%s2 + $0x68] sm:$0xf]
      %v968 = vld [vmem:[%s2 + $0x6c] sm:$0xf]
      %v969 = vld [vmem:[%s2 + $0x70] sm:$0xf]
      %v970 = vld [vmem:[%s2 + $0x74] sm:$0xf]
      %v971 = vld [vmem:[%s2 + $0x78] sm:$0xf]
      %v972 = vld [vmem:[%s2 + $0x7c] sm:$0xf]
      %v973 = vld [vmem:[#allocation2 + $0x10] sm:$0x11]
      %s974 = scalar_lea.vmem %s2, 128
      %v975 = vld [vmem:[%s974] sm:$0xf]
      %v976 = vld [vmem:[%s974 + $0x4] sm:$0xf]
      %v977 = vld [vmem:[%s974 + $0x8] sm:$0xf]
      %v978 = vld [vmem:[%s974 + $0xc] sm:$0xf]
      %v979 = vld [vmem:[%s974 + $0x10] sm:$0xf]
      %v980 = vld [vmem:[%s974 + $0x14] sm:$0xf]
      %v981 = vld [vmem:[%s974 + $0x18] sm:$0xf]
      %v982 = vld [vmem:[%s974 + $0x1c] sm:$0xf]
      %v983 = vld [vmem:[%s974 + $0x20] sm:$0xf]
      %v984 = vld [vmem:[%s974 + $0x24] sm:$0xf]
      %v985 = vld [vmem:[%s974 + $0x28] sm:$0xf]
      %v986 = vld [vmem:[%s974 + $0x2c] sm:$0xf]
      %v987 = vld [vmem:[%s974 + $0x30] sm:$0xf]
      %v988 = vld [vmem:[%s974 + $0x34] sm:$0xf]
      %v989 = vld [vmem:[%s974 + $0x38] sm:$0xf]
      %v990 = vld [vmem:[%s974 + $0x3c] sm:$0xf]
      %v991 = vld [vmem:[%s974 + $0x40] sm:$0xf]
      %v992 = vld [vmem:[%s974 + $0x44] sm:$0xf]
      %v993 = vld [vmem:[%s974 + $0x48] sm:$0xf]
      %v994 = vld [vmem:[%s974 + $0x4c] sm:$0xf]
      %v995 = vld [vmem:[%s974 + $0x50] sm:$0xf]
      %v996 = vld [vmem:[%s974 + $0x54] sm:$0xf]
      %v997 = vld [vmem:[%s974 + $0x58] sm:$0xf]
      %v998 = vld [vmem:[%s974 + $0x5c] sm:$0xf]
      %v999 = vld [vmem:[%s974 + $0x60] sm:$0xf]
      %v1000 = vld [vmem:[%s974 + $0x64] sm:$0xf]
      %v1001 = vld [vmem:[%s974 + $0x68] sm:$0xf]
      %v1002 = vld [vmem:[%s974 + $0x6c] sm:$0xf]
      %v1003 = vld [vmem:[%s974 + $0x70] sm:$0xf]
      %v1004 = vld [vmem:[%s974 + $0x74] sm:$0xf]
      %v1005 = vld [vmem:[%s974 + $0x78] sm:$0xf]
      %v1006 = vld [vmem:[%s974 + $0x7c] sm:$0xf]
      %v1010 = vunpack.c.l.b16 %v939
      %v1011 = vunpack.c.h.b16 %v939
      %v1012 = vunpack.c.l.b16 %v940
      %v1013 = vunpack.c.h.b16 %v940
      %v1014 = vunpack.c.l.b16 %v973
      %v1015 = vunpack.c.h.b16 %v973
      %v1016 = vpack.c.b16 %v1012, %v1010
      %v1017 = vpack.c.b16 %v1013, %v1011
      %v1018 = vpack.c.b16 %v1014, %v1014
      %v1019 = vpack.c.b16 %v1015, %v1015
      %v1021 = vshrl.u32 %v1016, 16
      %v1023 = vshll.u32 %v1016, 16
      %v1025 = vrot.slane %v1023, 1
      %v1026 = vor.u32 %v1021, %v1025
      %v1028 = vshll.u32 %v1018, 16
      %v1030 = vrot.slane %v1028, 1
      %v1031 = vsel %vm433, %v1026, %v1030
      %v1033 = vshrl.u32 %v1017, 16
      %v1035 = vshll.u32 %v1017, 16
      %v1037 = vrot.slane %v1035, 1
      %v1038 = vor.u32 %v1033, %v1037
      %v1040 = vshll.u32 %v1019, 16
      %v1042 = vrot.slane %v1040, 1
      %v1043 = vsel %vm433, %v1038, %v1042
      %v1078 = vunpack.c.l.b16 %v975
      %v1079 = vunpack.c.l.b16 %v976
      %v1080 = vunpack.c.l.b16 %v977
      %v1081 = vunpack.c.l.b16 %v978
      %v1082 = vunpack.c.l.b16 %v979
      %v1083 = vunpack.c.l.b16 %v980
      %v1084 = vunpack.c.l.b16 %v981
      %v1085 = vunpack.c.l.b16 %v982
      %v1086 = vunpack.c.l.b16 %v983
      %v1087 = vunpack.c.l.b16 %v984
      %v1088 = vunpack.c.l.b16 %v985
      %v1089 = vunpack.c.l.b16 %v986
      %v1090 = vunpack.c.l.b16 %v987
      %v1091 = vunpack.c.l.b16 %v988
      %v1092 = vunpack.c.l.b16 %v989
      %v1093 = vunpack.c.l.b16 %v990
      %v1094 = vunpack.c.l.b16 %v991
      %v1095 = vunpack.c.l.b16 %v992
      %v1096 = vunpack.c.l.b16 %v993
      %v1097 = vunpack.c.l.b16 %v994
      %v1098 = vunpack.c.l.b16 %v995
      %v1099 = vunpack.c.l.b16 %v996
      %v1100 = vunpack.c.l.b16 %v997
      %v1101 = vunpack.c.l.b16 %v998
      %v1102 = vunpack.c.l.b16 %v999
      %v1103 = vunpack.c.l.b16 %v1000
      %v1104 = vunpack.c.l.b16 %v1001
      %v1105 = vunpack.c.l.b16 %v1002
      %v1106 = vunpack.c.l.b16 %v1003
      %v1107 = vunpack.c.l.b16 %v1004
      %v1108 = vunpack.c.l.b16 %v1005
      %v1109 = vunpack.c.l.b16 %v1006
      %v1110 = vpack.c.b16 %v1079, %v1078
      %v1111 = vpack.c.b16 %v1081, %v1080
      %v1112 = vpack.c.b16 %v1083, %v1082
      %v1113 = vpack.c.b16 %v1085, %v1084
      %v1114 = vpack.c.b16 %v1087, %v1086
      %v1115 = vpack.c.b16 %v1089, %v1088
      %v1116 = vpack.c.b16 %v1091, %v1090
      %v1117 = vpack.c.b16 %v1093, %v1092
      %v1118 = vpack.c.b16 %v1095, %v1094
      %v1119 = vpack.c.b16 %v1097, %v1096
      %v1120 = vpack.c.b16 %v1099, %v1098
      %v1121 = vpack.c.b16 %v1101, %v1100
      %v1122 = vpack.c.b16 %v1103, %v1102
      %v1123 = vpack.c.b16 %v1105, %v1104
      %v1124 = vpack.c.b16 %v1107, %v1106
      %v1125 = vpack.c.b16 %v1109, %v1108
      %1142 = vmatprep.subr.bf16.mxu0 0
      %1143 = vmatpush1.bf16.msra.mxu0 %v1110
      %1144 = vmatprep.subr.bf16.mxu0 0
      %1145 = vmatpush1.bf16.msra.mxu0 %v1111
      %1146 = vmatprep.subr.bf16.mxu0 0
      %1147 = vmatpush1.bf16.msra.mxu0 %v1112
      %1148 = vmatprep.subr.bf16.mxu0 0
      %1149 = vmatpush1.bf16.msra.mxu0 %v1113
      %1150 = vmatprep.subr.bf16.mxu0 0
      %1151 = vmatpush1.bf16.msra.mxu0 %v1114
      %1152 = vmatprep.subr.bf16.mxu0 0
      %1153 = vmatpush1.bf16.msra.mxu0 %v1115
      %1154 = vmatprep.subr.bf16.mxu0 0
      %1155 = vmatpush1.bf16.msra.mxu0 %v1116
      %1156 = vmatprep.subr.bf16.mxu0 0
      %1157 = vmatpush1.bf16.msra.mxu0 %v1117
      %1158 = vmatprep.subr.bf16.mxu0 0
      %1159 = vmatpush1.bf16.msra.mxu0 %v1118
      %1160 = vmatprep.subr.bf16.mxu0 0
      %1161 = vmatpush1.bf16.msra.mxu0 %v1119
      %1162 = vmatprep.subr.bf16.mxu0 0
      %1163 = vmatpush1.bf16.msra.mxu0 %v1120
      %1164 = vmatprep.subr.bf16.mxu0 0
      %1165 = vmatpush1.bf16.msra.mxu0 %v1121
      %1166 = vmatprep.subr.bf16.mxu0 0
      %1167 = vmatpush1.bf16.msra.mxu0 %v1122
      %1168 = vmatprep.subr.bf16.mxu0 0
      %1169 = vmatpush1.bf16.msra.mxu0 %v1123
      %1170 = vmatprep.subr.bf16.mxu0 0
      %1171 = vmatpush1.bf16.msra.mxu0 %v1124
      %1172 = vmatprep.subr.bf16.mxu0 0
      %1173 = vmatpush1.bf16.msra.mxu0 %v1125
      %1174 = vmatprep.mubr.bf16.mxu0 %v1043
      %1175 = vmatmul.mubr.bf16.gmra.mrb[0].mxu0 %v1031
      %v1176 = vpop.f32.mrb[0].mxu0
      %v1177 = vadd.f32 0.0, %v1176
      %v1178 = vpop.f32.mrb[0].mxu0
      %v1179 = vpop.f32.mrb[0].mxu0
      %v1180 = vadd.f32 0.0, %v1179
      %v1181 = vpop.f32.mrb[0].mxu0
      %1182 = vdwg.mxu0
      %v1217 = vunpack.c.l.b16 %v941
      %v1218 = vunpack.c.l.b16 %v942
      %v1219 = vunpack.c.l.b16 %v943
      %v1220 = vunpack.c.l.b16 %v944
      %v1221 = vunpack.c.l.b16 %v945
      %v1222 = vunpack.c.l.b16 %v946
      %v1223 = vunpack.c.l.b16 %v947
      %v1224 = vunpack.c.l.b16 %v948
      %v1225 = vunpack.c.l.b16 %v949
      %v1226 = vunpack.c.l.b16 %v950
      %v1227 = vunpack.c.l.b16 %v951
      %v1228 = vunpack.c.l.b16 %v952
      %v1229 = vunpack.c.l.b16 %v953
      %v1230 = vunpack.c.l.b16 %v954
      %v1231 = vunpack.c.l.b16 %v955
      %v1232 = vunpack.c.l.b16 %v956
      %v1233 = vunpack.c.l.b16 %v957
      %v1234 = vunpack.c.l.b16 %v958
      %v1235 = vunpack.c.l.b16 %v959
      %v1236 = vunpack.c.l.b16 %v960
      %v1237 = vunpack.c.l.b16 %v961
      %v1238 = vunpack.c.l.b16 %v962
      %v1239 = vunpack.c.l.b16 %v963
      %v1240 = vunpack.c.l.b16 %v964
      %v1241 = vunpack.c.l.b16 %v965
      %v1242 = vunpack.c.l.b16 %v966
      %v1243 = vunpack.c.l.b16 %v967
      %v1244 = vunpack.c.l.b16 %v968
      %v1245 = vunpack.c.l.b16 %v969
      %v1246 = vunpack.c.l.b16 %v970
      %v1247 = vunpack.c.l.b16 %v971
      %v1248 = vunpack.c.l.b16 %v972
      %v1249 = vpack.c.b16 %v1218, %v1217
      %v1250 = vpack.c.b16 %v1220, %v1219
      %v1251 = vpack.c.b16 %v1222, %v1221
      %v1252 = vpack.c.b16 %v1224, %v1223
      %v1253 = vpack.c.b16 %v1226, %v1225
      %v1254 = vpack.c.b16 %v1228, %v1227
      %v1255 = vpack.c.b16 %v1230, %v1229
      %v1256 = vpack.c.b16 %v1232, %v1231
      %v1257 = vpack.c.b16 %v1234, %v1233
      %v1258 = vpack.c.b16 %v1236, %v1235
      %v1259 = vpack.c.b16 %v1238, %v1237
      %v1260 = vpack.c.b16 %v1240, %v1239
      %v1261 = vpack.c.b16 %v1242, %v1241
      %v1262 = vpack.c.b16 %v1244, %v1243
      %v1263 = vpack.c.b16 %v1246, %v1245
      %v1264 = vpack.c.b16 %v1248, %v1247
      %1281 = vmatprep.subr.bf16.mxu0 0
      %1282 = vmatpush1.bf16.msra.mxu0 %v1249
      %1283 = vmatprep.subr.bf16.mxu0 0
      %1284 = vmatpush1.bf16.msra.mxu0 %v1250
      %1285 = vmatprep.subr.bf16.mxu0 0
      %1286 = vmatpush1.bf16.msra.mxu0 %v1251
      %1287 = vmatprep.subr.bf16.mxu0 0
      %1288 = vmatpush1.bf16.msra.mxu0 %v1252
      %1289 = vmatprep.subr.bf16.mxu0 0
      %1290 = vmatpush1.bf16.msra.mxu0 %v1253
      %1291 = vmatprep.subr.bf16.mxu0 0
      %1292 = vmatpush1.bf16.msra.mxu0 %v1254
      %1293 = vmatprep.subr.bf16.mxu0 0
      %1294 = vmatpush1.bf16.msra.mxu0 %v1255
      %1295 = vmatprep.subr.bf16.mxu0 0
      %1296 = vmatpush1.bf16.msra.mxu0 %v1256
      %1297 = vmatprep.subr.bf16.mxu0 0
      %1298 = vmatpush1.bf16.msra.mxu0 %v1257
      %1299 = vmatprep.subr.bf16.mxu0 0
      %1300 = vmatpush1.bf16.msra.mxu0 %v1258
      %1301 = vmatprep.subr.bf16.mxu0 0
      %1302 = vmatpush1.bf16.msra.mxu0 %v1259
      %1303 = vmatprep.subr.bf16.mxu0 0
      %1304 = vmatpush1.bf16.msra.mxu0 %v1260
      %1305 = vmatprep.subr.bf16.mxu0 0
      %1306 = vmatpush1.bf16.msra.mxu0 %v1261
      %1307 = vmatprep.subr.bf16.mxu0 0
      %1308 = vmatpush1.bf16.msra.mxu0 %v1262
      %1309 = vmatprep.subr.bf16.mxu0 0
      %1310 = vmatpush1.bf16.msra.mxu0 %v1263
      %1311 = vmatprep.subr.bf16.mxu0 0
      %1312 = vmatpush1.bf16.msra.mxu0 %v1264
      %1313 = vmatprep.mubr.bf16.mxu0 %v1017
      %1314 = vmatmul.mubr.bf16.gmra.mrb[0].mxu0 %v1016
      %v1315 = vpop.f32.mrb[0].mxu0
      %v1316 = vadd.f32 %v1177, %v1315
      %v1317 = vpop.f32.mrb[0].mxu0
      %v1318 = vpop.f32.mrb[0].mxu0
      %v1319 = vadd.f32 %v1180, %v1318
      %v1320 = vpop.f32.mrb[0].mxu0
      %1321 = vdwg.mxu0
      %v1322 = vld [vmem:[#allocation2] sm:$0xee]
      %s1323 = scalar_lea.vmem %s2, 256
      %v1324 = vld [vmem:[%s1323] sm:$0xf]
      %v1325 = vld [vmem:[%s1323 + $0x4] sm:$0xf]
      %v1326 = vld [vmem:[%s1323 + $0x8] sm:$0xf]
      %v1327 = vld [vmem:[%s1323 + $0xc] sm:$0xf]
      %v1328 = vld [vmem:[%s1323 + $0x10] sm:$0xf]
      %v1329 = vld [vmem:[%s1323 + $0x14] sm:$0xf]
      %v1330 = vld [vmem:[%s1323 + $0x18] sm:$0xf]
      %v1331 = vld [vmem:[%s1323 + $0x1c] sm:$0xf]
      %v1332 = vld [vmem:[%s1323 + $0x20] sm:$0xf]
      %v1333 = vld [vmem:[%s1323 + $0x24] sm:$0xf]
      %v1334 = vld [vmem:[%s1323 + $0x28] sm:$0xf]
      %v1335 = vld [vmem:[%s1323 + $0x2c] sm:$0xf]
      %v1336 = vld [vmem:[%s1323 + $0x30] sm:$0xf]
      %v1337 = vld [vmem:[%s1323 + $0x34] sm:$0xf]
      %v1338 = vld [vmem:[%s1323 + $0x38] sm:$0xf]
      %v1339 = vld [vmem:[%s1323 + $0x3c] sm:$0xf]
      %v1340 = vld [vmem:[%s1323 + $0x40] sm:$0xf]
      %v1341 = vld [vmem:[%s1323 + $0x44] sm:$0xf]
      %v1342 = vld [vmem:[%s1323 + $0x48] sm:$0xf]
      %v1343 = vld [vmem:[%s1323 + $0x4c] sm:$0xf]
      %v1344 = vld [vmem:[%s1323 + $0x50] sm:$0xf]
      %v1345 = vld [vmem:[%s1323 + $0x54] sm:$0xf]
      %v1346 = vld [vmem:[%s1323 + $0x58] sm:$0xf]
      %v1347 = vld [vmem:[%s1323 + $0x5c] sm:$0xf]
      %v1348 = vld [vmem:[%s1323 + $0x60] sm:$0xf]
      %v1349 = vld [vmem:[%s1323 + $0x64] sm:$0xf]
      %v1350 = vld [vmem:[%s1323 + $0x68] sm:$0xf]
      %v1351 = vld [vmem:[%s1323 + $0x6c] sm:$0xf]
      %v1352 = vld [vmem:[%s1323 + $0x70] sm:$0xf]
      %v1353 = vld [vmem:[%s1323 + $0x74] sm:$0xf]
      %v1354 = vld [vmem:[%s1323 + $0x78] sm:$0xf]
      %v1355 = vld [vmem:[%s1323 + $0x7c] sm:$0xf]
      %v1357 = vunpack.c.l.b16 %v1322
      %v1358 = vunpack.c.h.b16 %v1322
      %v1359 = vpack.c.b16 %v1012, %v1357
      %v1360 = vpack.c.b16 %v1013, %v1358
      %v1361 = vrot.slane %v1359, 1
      %v1362 = vrot.slane %v1018, 1
      %v1363 = vsel %vm643, %v1361, %v1362
      %v1364 = vrot.slane %v1360, 1
      %v1365 = vrot.slane %v1019, 1
      %v1366 = vsel %vm643, %v1364, %v1365
      %v1401 = vunpack.c.l.b16 %v1324
      %v1402 = vunpack.c.l.b16 %v1325
      %v1403 = vunpack.c.l.b16 %v1326
      %v1404 = vunpack.c.l.b16 %v1327
      %v1405 = vunpack.c.l.b16 %v1328
      %v1406 = vunpack.c.l.b16 %v1329
      %v1407 = vunpack.c.l.b16 %v1330
      %v1408 = vunpack.c.l.b16 %v1331
      %v1409 = vunpack.c.l.b16 %v1332
      %v1410 = vunpack.c.l.b16 %v1333
      %v1411 = vunpack.c.l.b16 %v1334
      %v1412 = vunpack.c.l.b16 %v1335
      %v1413 = vunpack.c.l.b16 %v1336
      %v1414 = vunpack.c.l.b16 %v1337
      %v1415 = vunpack.c.l.b16 %v1338
      %v1416 = vunpack.c.l.b16 %v1339
      %v1417 = vunpack.c.l.b16 %v1340
      %v1418 = vunpack.c.l.b16 %v1341
      %v1419 = vunpack.c.l.b16 %v1342
      %v1420 = vunpack.c.l.b16 %v1343
      %v1421 = vunpack.c.l.b16 %v1344
      %v1422 = vunpack.c.l.b16 %v1345
      %v1423 = vunpack.c.l.b16 %v1346
      %v1424 = vunpack.c.l.b16 %v1347
      %v1425 = vunpack.c.l.b16 %v1348
      %v1426 = vunpack.c.l.b16 %v1349
      %v1427 = vunpack.c.l.b16 %v1350
      %v1428 = vunpack.c.l.b16 %v1351
      %v1429 = vunpack.c.l.b16 %v1352
      %v1430 = vunpack.c.l.b16 %v1353
      %v1431 = vunpack.c.l.b16 %v1354
      %v1432 = vunpack.c.l.b16 %v1355
      %v1433 = vpack.c.b16 %v1402, %v1401
      %v1434 = vpack.c.b16 %v1404, %v1403
      %v1435 = vpack.c.b16 %v1406, %v1405
      %v1436 = vpack.c.b16 %v1408, %v1407
      %v1437 = vpack.c.b16 %v1410, %v1409
      %v1438 = vpack.c.b16 %v1412, %v1411
      %v1439 = vpack.c.b16 %v1414, %v1413
      %v1440 = vpack.c.b16 %v1416, %v1415
      %v1441 = vpack.c.b16 %v1418, %v1417
      %v1442 = vpack.c.b16 %v1420, %v1419
      %v1443 = vpack.c.b16 %v1422, %v1421
      %v1444 = vpack.c.b16 %v1424, %v1423
      %v1445 = vpack.c.b16 %v1426, %v1425
      %v1446 = vpack.c.b16 %v1428, %v1427
      %v1447 = vpack.c.b16 %v1430, %v1429
      %v1448 = vpack.c.b16 %v1432, %v1431
      %1465 = vmatprep.subr.bf16.mxu0 0
      %1466 = vmatpush1.bf16.msra.mxu0 %v1433
      %1467 = vmatprep.subr.bf16.mxu0 0
      %1468 = vmatpush1.bf16.msra.mxu0 %v1434
      %1469 = vmatprep.subr.bf16.mxu0 0
      %1470 = vmatpush1.bf16.msra.mxu0 %v1435
      %1471 = vmatprep.subr.bf16.mxu0 0
      %1472 = vmatpush1.bf16.msra.mxu0 %v1436
      %1473 = vmatprep.subr.bf16.mxu0 0
      %1474 = vmatpush1.bf16.msra.mxu0 %v1437
      %1475 = vmatprep.subr.bf16.mxu0 0
      %1476 = vmatpush1.bf16.msra.mxu0 %v1438
      %1477 = vmatprep.subr.bf16.mxu0 0
      %1478 = vmatpush1.bf16.msra.mxu0 %v1439
      %1479 = vmatprep.subr.bf16.mxu0 0
      %1480 = vmatpush1.bf16.msra.mxu0 %v1440
      %1481 = vmatprep.subr.bf16.mxu0 0
      %1482 = vmatpush1.bf16.msra.mxu0 %v1441
      %1483 = vmatprep.subr.bf16.mxu0 0
      %1484 = vmatpush1.bf16.msra.mxu0 %v1442
      %1485 = vmatprep.subr.bf16.mxu0 0
      %1486 = vmatpush1.bf16.msra.mxu0 %v1443
      %1487 = vmatprep.subr.bf16.mxu0 0
      %1488 = vmatpush1.bf16.msra.mxu0 %v1444
      %1489 = vmatprep.subr.bf16.mxu0 0
      %1490 = vmatpush1.bf16.msra.mxu0 %v1445
      %1491 = vmatprep.subr.bf16.mxu0 0
      %1492 = vmatpush1.bf16.msra.mxu0 %v1446
      %1493 = vmatprep.subr.bf16.mxu0 0
      %1494 = vmatpush1.bf16.msra.mxu0 %v1447
      %1495 = vmatprep.subr.bf16.mxu0 0
      %1496 = vmatpush1.bf16.msra.mxu0 %v1448
      %1497 = vmatprep.mubr.bf16.mxu0 %v1366
      %1498 = vmatmul.mubr.bf16.gmra.mrb[0].mxu0 %v1363
      %v1499 = vpop.f32.mrb[0].mxu0
      %v1500 = vadd.f32 0.0, %v1499
      %v1501 = vpop.f32.mrb[0].mxu0
      %v1502 = vpop.f32.mrb[0].mxu0
      %v1503 = vadd.f32 0.0, %v1502
      %v1504 = vpop.f32.mrb[0].mxu0
      %1505 = vdwg.mxu0
      %v1506 = vadd.f32 %v1316, %v1500
      %v1507 = vadd.f32 %v1319, %v1503
      %v1508 = vlaneseq
      %v1509 = vshrl.u32 %v1508, 7
      %v1510 = vsub.s32 2, %v1509
      %v1511 = vrot.slane %v391, %v1510
      %v1512 = vmul.f32 %v1506, %v1511
      %v1513 = vmul.f32 %v1507, %v1511
      %v1514 = vlaneseq
      %v1515 = vshrl.u32 %v1514, 7
      %v1516 = vsub.s32 3, %v1515
      %v1517 = vrot.slane %v391, %v1516
      %v1518 = vadd.f32 %v1512, %v1517
      %v1519 = vadd.f32 %v1513, %v1517
      %v1520 = vpack.c.bf16 %v1519, %v1518
      %v1521 = vld [vmem:[%s6] sm:$0x3]
      %v1522 = vld [vmem:[%s9] sm:$0x3]
      %v1523 = vld [vmem:[%s4] sm:$0xf]
      %v1524 = vld [vmem:[%s4 + $0x4] sm:$0xf]
      %v1525 = vld [vmem:[%s4 + $0x8] sm:$0xf]
      %v1526 = vld [vmem:[%s4 + $0xc] sm:$0xf]
      %v1527 = vld [vmem:[%s4 + $0x10] sm:$0xf]
      %v1528 = vld [vmem:[%s4 + $0x14] sm:$0xf]
      %v1529 = vld [vmem:[%s4 + $0x18] sm:$0xf]
      %v1530 = vld [vmem:[%s4 + $0x1c] sm:$0xf]
      %v1531 = vld [vmem:[%s4 + $0x20] sm:$0xf]
      %v1532 = vld [vmem:[%s4 + $0x24] sm:$0xf]
      %v1533 = vld [vmem:[%s4 + $0x28] sm:$0xf]
      %v1534 = vld [vmem:[%s4 + $0x2c] sm:$0xf]
      %v1535 = vld [vmem:[%s4 + $0x30] sm:$0xf]
      %v1536 = vld [vmem:[%s4 + $0x34] sm:$0xf]
      %v1537 = vld [vmem:[%s4 + $0x38] sm:$0xf]
      %v1538 = vld [vmem:[%s4 + $0x3c] sm:$0xf]
      %v1555 = vunpack.c.l.b16 %v1523
      %v1556 = vunpack.c.l.b16 %v1524
      %v1557 = vunpack.c.l.b16 %v1525
      %v1558 = vunpack.c.l.b16 %v1526
      %v1559 = vunpack.c.l.b16 %v1527
      %v1560 = vunpack.c.l.b16 %v1528
      %v1561 = vunpack.c.l.b16 %v1529
      %v1562 = vunpack.c.l.b16 %v1530
      %v1563 = vunpack.c.l.b16 %v1531
      %v1564 = vunpack.c.l.b16 %v1532
      %v1565 = vunpack.c.l.b16 %v1533
      %v1566 = vunpack.c.l.b16 %v1534
      %v1567 = vunpack.c.l.b16 %v1535
      %v1568 = vunpack.c.l.b16 %v1536
      %v1569 = vunpack.c.l.b16 %v1537
      %v1570 = vunpack.c.l.b16 %v1538
      %v1571 = vpack.c.b16 %v1556, %v1555
      %v1572 = vpack.c.b16 %v1558, %v1557
      %v1573 = vpack.c.b16 %v1560, %v1559
      %v1574 = vpack.c.b16 %v1562, %v1561
      %v1575 = vpack.c.b16 %v1564, %v1563
      %v1576 = vpack.c.b16 %v1566, %v1565
      %v1577 = vpack.c.b16 %v1568, %v1567
      %v1578 = vpack.c.b16 %v1570, %v1569
      %1587 = vmatprep.subr.bf16.mxu0 0
      %1588 = vmatpush1.bf16.msra.mxu0 %v1571
      %1589 = vmatprep.subr.bf16.mxu0 0
      %1590 = vmatpush1.bf16.msra.mxu0 %v1572
      %1591 = vmatprep.subr.bf16.mxu0 0
      %1592 = vmatpush1.bf16.msra.mxu0 %v1573
      %1593 = vmatprep.subr.bf16.mxu0 0
      %1594 = vmatpush1.bf16.msra.mxu0 %v1574
      %1595 = vmatprep.subr.bf16.mxu0 0
      %1596 = vmatpush1.bf16.msra.mxu0 %v1575
      %1597 = vmatprep.subr.bf16.mxu0 0
      %1598 = vmatpush1.bf16.msra.mxu0 %v1576
      %1599 = vmatprep.subr.bf16.mxu0 0
      %1600 = vmatpush1.bf16.msra.mxu0 %v1577
      %1601 = vmatprep.subr.bf16.mxu0 0
      %1602 = vmatpush1.bf16.msra.mxu0 %v1578
      %1603 = vmatprep.subr.bf16.mxu0 0
      %1604 = vmatpush1.bf16.msra.mxu0 0
      %1605 = vmatprep.subr.bf16.mxu0 0
      %1606 = vmatpush1.bf16.msra.mxu0 0
      %1607 = vmatprep.subr.bf16.mxu0 0
      %1608 = vmatpush1.bf16.msra.mxu0 0
      %1609 = vmatprep.subr.bf16.mxu0 0
      %1610 = vmatpush1.bf16.msra.mxu0 0
      %1611 = vmatprep.subr.bf16.mxu0 0
      %1612 = vmatpush1.bf16.msra.mxu0 0
      %1613 = vmatprep.subr.bf16.mxu0 0
      %1614 = vmatpush1.bf16.msra.mxu0 0
      %1615 = vmatprep.subr.bf16.mxu0 0
      %1616 = vmatpush1.bf16.msra.mxu0 0
      %1617 = vmatprep.subr.bf16.mxu0 0
      %1618 = vmatpush1.bf16.msra.mxu0 0
      %1619 = vmatprep.mubr.bf16.mxu0 0
      %1620 = vmatmul.mubr.bf16.gmra.mrb[0].mxu0 %v1520
      %v1621 = vpop.f32.mrb[0].mxu0
      %v1622 = vadd.f32 0.0, %v1621
      %v1623 = vpop.f32.mrb[0].mxu0
      %v1624 = vpop.f32.mrb[0].mxu0
      %v1625 = vadd.f32 0.0, %v1624
      %v1626 = vpop.f32.mrb[0].mxu0
      %1627 = vdwg.mxu0
      %v1628 = vpack.c.bf16 %v1625, %v1622
      %v1629 = vld [vmem:[%s5] sm:$0xf]
      %vm1630 = vcmask 64512
      %v1632 = vsel %vm1630, %v1628, 0
      %vm1634 = vcmask 1043456
      %v1636 = vsel %vm1634, %v1629, 0
      %1638 = vmatprep.subr.bf16.mxu0 0
      %1639 = vmatpush1.bf16.msra.mxu0 %v1636
      %1640 = vmatprep.subr.bf16.mxu0 0
      %1641 = vmatpush1.bf16.msra.mxu0 0
      %1642 = vmatprep.subr.bf16.mxu0 0
      %1643 = vmatpush1.bf16.msra.mxu0 0
      %1644 = vmatprep.subr.bf16.mxu0 0
      %1645 = vmatpush1.bf16.msra.mxu0 0
      %1646 = vmatprep.subr.bf16.mxu0 0
      %1647 = vmatpush1.bf16.msra.mxu0 0
      %1648 = vmatprep.subr.bf16.mxu0 0
      %1649 = vmatpush1.bf16.msra.mxu0 0
      %1650 = vmatprep.subr.bf16.mxu0 0
      %1651 = vmatpush1.bf16.msra.mxu0 0
      %1652 = vmatprep.subr.bf16.mxu0 0
      %1653 = vmatpush1.bf16.msra.mxu0 0
      %1654 = vmatprep.subr.bf16.mxu0 0
      %1655 = vmatpush1.bf16.msra.mxu0 0
      %1656 = vmatprep.subr.bf16.mxu0 0
      %1657 = vmatpush1.bf16.msra.mxu0 0
      %1658 = vmatprep.subr.bf16.mxu0 0
      %1659 = vmatpush1.bf16.msra.mxu0 0
      %1660 = vmatprep.subr.bf16.mxu0 0
      %1661 = vmatpush1.bf16.msra.mxu0 0
      %1662 = vmatprep.subr.bf16.mxu0 0
      %1663 = vmatpush1.bf16.msra.mxu0 0
      %1664 = vmatprep.subr.bf16.mxu0 0
      %1665 = vmatpush1.bf16.msra.mxu0 0
      %1666 = vmatprep.subr.bf16.mxu0 0
      %1667 = vmatpush1.bf16.msra.mxu0 0
      %1668 = vmatprep.subr.bf16.mxu0 0
      %1669 = vmatpush1.bf16.msra.mxu0 0
      %1670 = vmatprep.mubr.bf16.mxu0 0
      %1671 = vmatmul.mubr.bf16.gmra.mrb[0].mxu0 %v1632
      %v1672 = vpop.f32.mrb[0].mxu0
      %v1673 = vadd.f32 0.0, %v1672
      %v1674 = vpop.f32.mrb[0].mxu0
      %v1675 = vpop.f32.mrb[0].mxu0
      %v1676 = vadd.f32 0.0, %v1675
      %v1677 = vpop.f32.mrb[0].mxu0
      %1678 = vdwg.mxu0
      %v1679 = vlaneseq
      %v1680 = vshrl.u32 %v1679, 7
      %v1681 = vsub.s32 0, %v1680
      %v1682 = vrot.slane %v1521, %v1681
      %v1683 = vmul.f32 %v1673, %v1682
      %v1684 = vmul.f32 %v1676, %v1682
      %v1685 = vlaneseq
      %v1686 = vshrl.u32 %v1685, 7
      %v1687 = vsub.s32 1, %v1686
      %v1688 = vrot.slane %v1521, %v1687
      %v1689 = vadd.f32 %v1683, %v1688
      %v1690 = vadd.f32 %v1684, %v1688
      %v1691 = vadd.f32 %v1689, 3.0
      %v1692 = vadd.f32 %v1690, 3.0
      %v1693 = vmax.f32 %v1691, 0.0
      %v1694 = vmax.f32 %v1692, 0.0
      %v1695 = vmin.f32 %v1693, 6.0
      %v1696 = vmin.f32 %v1694, 6.0
      %v1697 = vmul.f32 %v1689, %v1695
      %v1698 = vmul.f32 %v1690, %v1696
      %v1699 = vmul.f32 %v1697, 0.16666667
      %v1700 = vmul.f32 %v1698, 0.16666667
      %v1701 = vpack.c.bf16 %v1700, %v1699
      %v1702 = vld [vmem:[%s7] sm:$0xf]
      %v1703 = vlaneseq
      %v1704 = vshrl.u32 %v1703, 7
      %v1705 = vsub.s32 6, %v1704
      %v1706 = vrot.slane %v391, %v1705
      %v1708 = vsel %vm1630, %v1701, 0
      %v1711 = vsel %vm1634, %v1702, 0
      %1713 = vmatprep.subr.bf16.mxu0 0
      %1714 = vmatpush1.bf16.msra.mxu0 %v1711
      %1715 = vmatprep.subr.bf16.mxu0 0
      %1716 = vmatpush1.bf16.msra.mxu0 0
      %1717 = vmatprep.subr.bf16.mxu0 0
      %1718 = vmatpush1.bf16.msra.mxu0 0
      %1719 = vmatprep.subr.bf16.mxu0 0
      %1720 = vmatpush1.bf16.msra.mxu0 0
      %1721 = vmatprep.subr.bf16.mxu0 0
      %1722 = vmatpush1.bf16.msra.mxu0 0
      %1723 = vmatprep.subr.bf16.mxu0 0
      %1724 = vmatpush1.bf16.msra.mxu0 0
      %1725 = vmatprep.subr.bf16.mxu0 0
      %1726 = vmatpush1.bf16.msra.mxu0 0
      %1727 = vmatprep.subr.bf16.mxu0 0
      %1728 = vmatpush1.bf16.msra.mxu0 0
      %1729 = vmatprep.subr.bf16.mxu0 0
      %1730 = vmatpush1.bf16.msra.mxu0 0
      %1731 = vmatprep.subr.bf16.mxu0 0
      %1732 = vmatpush1.bf16.msra.mxu0 0
      %1733 = vmatprep.subr.bf16.mxu0 0
      %1734 = vmatpush1.bf16.msra.mxu0 0
      %1735 = vmatprep.subr.bf16.mxu0 0
      %1736 = vmatpush1.bf16.msra.mxu0 0
      %1737 = vmatprep.subr.bf16.mxu0 0
      %1738 = vmatpush1.bf16.msra.mxu0 0
      %1739 = vmatprep.subr.bf16.mxu0 0
      %1740 = vmatpush1.bf16.msra.mxu0 0
      %1741 = vmatprep.subr.bf16.mxu0 0
      %1742 = vmatpush1.bf16.msra.mxu0 0
      %1743 = vmatprep.subr.bf16.mxu0 0
      %1744 = vmatpush1.bf16.msra.mxu0 0
      %1745 = vmatprep.mubr.bf16.mxu0 0
      %1746 = vmatmul.mubr.bf16.gmra.mrb[0].mxu0 %v1708
      %v1747 = vpop.f32.mrb[0].mxu0
      %v1748 = vadd.f32 %v1706, %v1747
      %v1749 = vpop.f32.mrb[0].mxu0
      %v1750 = vpop.f32.mrb[0].mxu0
      %v1751 = vadd.f32 %v1706, %v1750
      %v1752 = vpop.f32.mrb[0].mxu0
      %1753 = vdwg.mxu0
      %v1754 = vmax.f32 %v1748, -30.0
      %v1755 = vmax.f32 %v1751, -30.0
      %v1756 = vmin.f32 %v1754, 30.0
      %v1757 = vmin.f32 %v1755, 30.0
      %v1758 = vsub.f32 0.0, %v1756
      %v1759 = vsub.f32 0.0, %v1757
      %v1760 = vmul.f32 %v1758, 1.442695
      %v1761 = vpow.pop %v1760
      %v1762 = vmul.f32 %v1759, 1.442695
      %v1763 = vpow.pop %v1762
      %v1764 = vadd.f32 %v1761, 1.0
      %v1765 = vadd.f32 %v1763, 1.0
      %v1766 = vrcp.pop %v1764
      %v1767 = vrcp.pop %v1765
      %v1768 = vunpack.c.l.bf16 %v1520
      %v1769 = vunpack.c.h.bf16 %v1520
      %v1770 = vadd.f32 %v1768, %v1769
      %v1771 = vrot.slane %v1770, 4
      %v1772 = vadd.f32 %v1770, %v1771
      %v1773 = vrot.slane %v1772, 2
      %v1774 = vadd.f32 %v1772, %v1773
      %v1775 = vrot.slane %v1774, 1
      %v1776 = vadd.f32 %v1774, %v1775
      %v1777 = vrcp.pop 16.0
      %v1778 = vmul.f32 %v1776, %v1777
      %v1779 = vpack.c.bf16 %v1778, %v1778
      %v1780 = vld [vmem:[%s8] sm:$0xf]
      %v1781 = vld [vmem:[%s8 + $0x4] sm:$0xf]
      %v1782 = vld [vmem:[%s8 + $0x8] sm:$0xf]
      %v1783 = vld [vmem:[%s8 + $0xc] sm:$0xf]
      %v1784 = vld [vmem:[%s8 + $0x10] sm:$0xf]
      %v1785 = vld [vmem:[%s8 + $0x14] sm:$0xf]
      %v1786 = vld [vmem:[%s8 + $0x18] sm:$0xf]
      %v1787 = vld [vmem:[%s8 + $0x1c] sm:$0xf]
      %v1788 = vld [vmem:[%s8 + $0x20] sm:$0xf]
      %v1789 = vld [vmem:[%s8 + $0x24] sm:$0xf]
      %v1790 = vld [vmem:[%s8 + $0x28] sm:$0xf]
      %v1791 = vld [vmem:[%s8 + $0x2c] sm:$0xf]
      %v1792 = vld [vmem:[%s8 + $0x30] sm:$0xf]
      %v1793 = vld [vmem:[%s8 + $0x34] sm:$0xf]
      %v1794 = vld [vmem:[%s8 + $0x38] sm:$0xf]
      %v1795 = vld [vmem:[%s8 + $0x3c] sm:$0xf]
      %v1812 = vunpack.c.l.b16 %v1780
      %v1813 = vunpack.c.l.b16 %v1781
      %v1814 = vunpack.c.l.b16 %v1782
      %v1815 = vunpack.c.l.b16 %v1783
      %v1816 = vunpack.c.l.b16 %v1784
      %v1817 = vunpack.c.l.b16 %v1785
      %v1818 = vunpack.c.l.b16 %v1786
      %v1819 = vunpack.c.l.b16 %v1787
      %v1820 = vunpack.c.l.b16 %v1788
      %v1821 = vunpack.c.l.b16 %v1789
      %v1822 = vunpack.c.l.b16 %v1790
      %v1823 = vunpack.c.l.b16 %v1791
      %v1824 = vunpack.c.l.b16 %v1792
      %v1825 = vunpack.c.l.b16 %v1793
      %v1826 = vunpack.c.l.b16 %v1794
      %v1827 = vunpack.c.l.b16 %v1795
      %v1828 = vpack.c.b16 %v1813, %v1812
      %v1829 = vpack.c.b16 %v1815, %v1814
      %v1830 = vpack.c.b16 %v1817, %v1816
      %v1831 = vpack.c.b16 %v1819, %v1818
      %v1832 = vpack.c.b16 %v1821, %v1820
      %v1833 = vpack.c.b16 %v1823, %v1822
      %v1834 = vpack.c.b16 %v1825, %v1824
      %v1835 = vpack.c.b16 %v1827, %v1826
      %1844 = vmatprep.subr.bf16.mxu0 0
      %1845 = vmatpush1.bf16.msra.mxu0 %v1828
      %1846 = vmatprep.subr.bf16.mxu0 0
      %1847 = vmatpush1.bf16.msra.mxu0 %v1829
      %1848 = vmatprep.subr.bf16.mxu0 0
      %1849 = vmatpush1.bf16.msra.mxu0 %v1830
      %1850 = vmatprep.subr.bf16.mxu0 0
      %1851 = vmatpush1.bf16.msra.mxu0 %v1831
      %1852 = vmatprep.subr.bf16.mxu0 0
      %1853 = vmatpush1.bf16.msra.mxu0 %v1832
      %1854 = vmatprep.subr.bf16.mxu0 0
      %1855 = vmatpush1.bf16.msra.mxu0 %v1833
      %1856 = vmatprep.subr.bf16.mxu0 0
      %1857 = vmatpush1.bf16.msra.mxu0 %v1834
      %1858 = vmatprep.subr.bf16.mxu0 0
      %1859 = vmatpush1.bf16.msra.mxu0 %v1835
      %1860 = vmatprep.subr.bf16.mxu0 0
      %1861 = vmatpush1.bf16.msra.mxu0 0
      %1862 = vmatprep.subr.bf16.mxu0 0
      %1863 = vmatpush1.bf16.msra.mxu0 0
      %1864 = vmatprep.subr.bf16.mxu0 0
      %1865 = vmatpush1.bf16.msra.mxu0 0
      %1866 = vmatprep.subr.bf16.mxu0 0
      %1867 = vmatpush1.bf16.msra.mxu0 0
      %1868 = vmatprep.subr.bf16.mxu0 0
      %1869 = vmatpush1.bf16.msra.mxu0 0
      %1870 = vmatprep.subr.bf16.mxu0 0
      %1871 = vmatpush1.bf16.msra.mxu0 0
      %1872 = vmatprep.subr.bf16.mxu0 0
      %1873 = vmatpush1.bf16.msra.mxu0 0
      %1874 = vmatprep.subr.bf16.mxu0 0
      %1875 = vmatpush1.bf16.msra.mxu0 0
      %1876 = vmatprep.mubr.bf16.mxu0 0
      %1877 = vmatmul.mubr.bf16.gmra.mrb[0].mxu0 %v1779
      %v1878 = vpop.f32.mrb[0].mxu0
      %v1879 = vadd.f32 0.0, %v1878
      %v1880 = vpop.f32.mrb[0].mxu0
      %v1881 = vpop.f32.mrb[0].mxu0
      %v1882 = vpop.f32.mrb[0].mxu0
      %1883 = vdwg.mxu0
      %v1884 = vmul.f32 %v1879, %v1522
      %v1886 = vrot.slane %v1522, 1
      %v1888 = vadd.f32 %v1884, %v1886
      %v1889 = vadd.f32 %v1888, 3.0
      %v1890 = vmax.f32 %v1889, 0.0
      %v1891 = vmin.f32 %v1890, 6.0
      %v1892 = vmul.f32 %v1888, %v1891
      %v1893 = vmul.f32 %v1892, 0.16666667
      %v1894 = vpack.c.bf16 %v1893, %v1893
      %v1895 = vld [vmem:[%s10] sm:$0xf]
      %v1896 = vld [vmem:[%s10 + $0x4] sm:$0xf]
      %v1897 = vld [vmem:[%s10 + $0x8] sm:$0xf]
      %v1898 = vld [vmem:[%s10 + $0xc] sm:$0xf]
      %v1899 = vld [vmem:[%s10 + $0x10] sm:$0xf]
      %v1900 = vld [vmem:[%s10 + $0x14] sm:$0xf]
      %v1901 = vld [vmem:[%s10 + $0x18] sm:$0xf]
      %v1902 = vld [vmem:[%s10 + $0x1c] sm:$0xf]
      %v1903 = vld [vmem:[%s10 + $0x20] sm:$0xf]
      %v1904 = vld [vmem:[%s10 + $0x24] sm:$0xf]
      %v1905 = vld [vmem:[%s10 + $0x28] sm:$0xf]
      %v1906 = vld [vmem:[%s10 + $0x2c] sm:$0xf]
      %v1907 = vld [vmem:[%s10 + $0x30] sm:$0xf]
      %v1908 = vld [vmem:[%s10 + $0x34] sm:$0xf]
      %v1909 = vld [vmem:[%s10 + $0x38] sm:$0xf]
      %v1910 = vld [vmem:[%s10 + $0x3c] sm:$0xf]
      %v1927 = vunpack.c.l.b16 %v1895
      %v1928 = vunpack.c.l.b16 %v1896
      %v1929 = vunpack.c.l.b16 %v1897
      %v1930 = vunpack.c.l.b16 %v1898
      %v1931 = vunpack.c.l.b16 %v1899
      %v1932 = vunpack.c.l.b16 %v1900
      %v1933 = vunpack.c.l.b16 %v1901
      %v1934 = vunpack.c.l.b16 %v1902
      %v1935 = vunpack.c.l.b16 %v1903
      %v1936 = vunpack.c.l.b16 %v1904
      %v1937 = vunpack.c.l.b16 %v1905
      %v1938 = vunpack.c.l.b16 %v1906
      %v1939 = vunpack.c.l.b16 %v1907
      %v1940 = vunpack.c.l.b16 %v1908
      %v1941 = vunpack.c.l.b16 %v1909
      %v1942 = vunpack.c.l.b16 %v1910
      %v1943 = vpack.c.b16 %v1928, %v1927
      %v1944 = vpack.c.b16 %v1930, %v1929
      %v1945 = vpack.c.b16 %v1932, %v1931
      %v1946 = vpack.c.b16 %v1934, %v1933
      %v1947 = vpack.c.b16 %v1936, %v1935
      %v1948 = vpack.c.b16 %v1938, %v1937
      %v1949 = vpack.c.b16 %v1940, %v1939
      %v1950 = vpack.c.b16 %v1942, %v1941
      %v1960 = vrot.slane %v391, 7
      %1962 = vmatprep.subr.bf16.mxu0 0
      %1963 = vmatpush1.bf16.msra.mxu0 %v1943
      %1964 = vmatprep.subr.bf16.mxu0 0
      %1965 = vmatpush1.bf16.msra.mxu0 %v1944
      %1966 = vmatprep.subr.bf16.mxu0 0
      %1967 = vmatpush1.bf16.msra.mxu0 %v1945
      %1968 = vmatprep.subr.bf16.mxu0 0
      %1969 = vmatpush1.bf16.msra.mxu0 %v1946
      %1970 = vmatprep.subr.bf16.mxu0 0
      %1971 = vmatpush1.bf16.msra.mxu0 %v1947
      %1972 = vmatprep.subr.bf16.mxu0 0
      %1973 = vmatpush1.bf16.msra.mxu0 %v1948
      %1974 = vmatprep.subr.bf16.mxu0 0
      %1975 = vmatpush1.bf16.msra.mxu0 %v1949
      %1976 = vmatprep.subr.bf16.mxu0 0
      %1977 = vmatpush1.bf16.msra.mxu0 %v1950
      %1978 = vmatprep.subr.bf16.mxu0 0
      %1979 = vmatpush1.bf16.msra.mxu0 0
      %1980 = vmatprep.subr.bf16.mxu0 0
      %1981 = vmatpush1.bf16.msra.mxu0 0
      %1982 = vmatprep.subr.bf16.mxu0 0
      %1983 = vmatpush1.bf16.msra.mxu0 0
      %1984 = vmatprep.subr.bf16.mxu0 0
      %1985 = vmatpush1.bf16.msra.mxu0 0
      %1986 = vmatprep.subr.bf16.mxu0 0
      %1987 = vmatpush1.bf16.msra.mxu0 0
      %1988 = vmatprep.subr.bf16.mxu0 0
      %1989 = vmatpush1.bf16.msra.mxu0 0
      %1990 = vmatprep.subr.bf16.mxu0 0
      %1991 = vmatpush1.bf16.msra.mxu0 0
      %1992 = vmatprep.subr.bf16.mxu0 0
      %1993 = vmatpush1.bf16.msra.mxu0 0
      %1994 = vmatprep.mubr.bf16.mxu0 0
      %1995 = vmatmul.mubr.bf16.gmra.mrb[0].mxu0 %v1894
      %v1996 = vpop.f32.mrb[0].mxu0
      %v1997 = vadd.f32 %v1960, %v1996
      %v1998 = vpop.f32.mrb[0].mxu0
      %v1999 = vpop.f32.mrb[0].mxu0
      %v2000 = vpop.f32.mrb[0].mxu0
      %2001 = vdwg.mxu0
      %v2002 = vmax.f32 %v1997, -30.0
      %v2003 = vmin.f32 %v2002, 30.0
      %v2004 = vsub.f32 0.0, %v2003
      %v2005 = vmul.f32 %v2004, 1.442695
      %v2006 = vpow.pop %v2005
      %v2007 = vadd.f32 %v2006, 1.0
      %v2008 = vrcp.pop %v2007
      %v2009 = vlaneseq
      %v2010 = vshrl.u32 %v2009, 7
      %v2011 = vsub.s32 0, %v2010
      %v2012 = vrot.slane %v2008, %v2011
      %v2013 = vmul.f32 %v1518, %v2012
      %v2014 = vmul.f32 %v1519, %v2012
      %v2015 = vmul.f32 %v2013, %v1766
      %v2016 = vmul.f32 %v2014, %v1767
      %v2017 = vadd.f32 %v2015, %v869
      %v2018 = vadd.f32 %v2016, %v870
      %v2019 = vmax.f32 %v2017, 0.0
      %v2020 = vmax.f32 %v2018, 0.0
      %v2021 = vpack.c.bf16 %v2020, %v2019
      %v2023 = vunpack.c.l.b16 %v2021
      %v2024 = vunpack.c.h.b16 %v2021
      %v2025 = vpack.c.b16 %v2023, %v2023
      %v2026 = vpack.c.b16 %v2024, %v2024
      %2029 = vst [vmem:[%s386] sm:$0xf] %v2025
      %2030 = vst [vmem:[%s386 + $0x4] sm:$0xf] %v2026
      %p2031 = scmp.lt.s32.totalorder %s22, 1
      %s2032 = scalar_select %p2031, %s22, 1
      %s2033 = smul.addr %s2032, 2
      %s2034 = smul.addr %s2033, 4
      %s2035 = scalar_lea.vmem %s11, %s2034
      // Predicated region
      $region65: #{res_cor_block_pallas.1} parent=63 // pred_check
        %p2036 = pneg %p276
      $region66: #{res_cor_block_pallas.1} parent=63 // pred_check_branch
        %2038 = sbr.rel (%p2036) target = $region68
      $region67: #{res_cor_block_pallas.1} parent=63 // pred_region
        _
      $region68: #{res_cor_block_pallas.1} parent=63 // pred_fallthru
        _
    $region64: #{res_cor_block_pallas.1} parent=5 // pred_fallthru
      _
    %p2039 = scmp.le.s32.totalorder 2, %s17
    // Predicated region
    $region69: #{res_cor_block_pallas.1} parent=5 // pred_check
      %p2040 = pneg %p2039
    $region70: #{res_cor_block_pallas.1} parent=5 // pred_check_branch
      %2042 = sbr.rel (%p2040) target = $region72
    $region71: #{res_cor_block_pallas.1} parent=5 // pred_region
      %s2043 = ssub.s32 %s17, 2
      // Predicated region
      $region73: #{res_cor_block_pallas.1} parent=71 // pred_check
        %p2044 = pneg %p282
      $region74: #{res_cor_block_pallas.1} parent=71 // pred_check_branch
        %2046 = sbr.rel (%p2044) target = $region76
      $region75: #{res_cor_block_pallas.1} parent=71 // pred_region
        %p2047 = scmp.lt.s32.totalorder %s23, 1
        %s2048 = scalar_select %p2047, %s23, 1
        %s2049 = smul.addr %s2048, 2
        %s2050 = smul.addr %s2049, 4
        %s2051 = scalar_lea.vmem %s11, %s2050
      $region76: #{res_cor_block_pallas.1} parent=71 // pred_fallthru
        _
    $region72: #{res_cor_block_pallas.1} parent=5 // pred_fallthru
      _
  $region6: #{res_cor_block_pallas.1} parent=0 // loop_footer
    %s21 = sadd.s32 1, %s17
  $region7: #{res_cor_block_pallas.1} parent=0 // loop_footer_branch
    %16 = sbr.rel target = $region3
  $region8: #{res_cor_block_pallas.1} parent=0 // loop_exit
    _

</llo_original>
